<compile_context>
chip_gen: v5e
topology: v5e:2x2
jax: 0.10.0
libtpu: 0.0.40
codegen_flags: <defaults>
</compile_context>

<pallas_src>
import numpy as np

import jax
import jax.numpy as jnp
from jax import lax
from jax.experimental import pallas as pl
from jax.experimental.pallas import tpu as pltpu


def _round_up(x, m):
    return (x + m - 1) // m * m


_TAPS = tuple((dh, dw) for dh in range(3) for dw in range(3))


# ----------------------------------------------------------------------------
# Fused DoubleConv kernel (one batch image x one H-tile per grid step)
# ----------------------------------------------------------------------------
def _make_double_conv_kernel(cfg):
    Wp = cfg['Wp']                # flat row stride (Wo + 2)
    LH_pad = cfg['LH_pad']        # conv1 output slab length (TH+2 rows, 128-padded)
    LT_pad = cfg['LT_pad']        # conv2/output slab length (TH rows, 128-padded)
    EH = cfg['EH']                # padded h1 buffer length
    mid_p = cfg['mid_p']
    cout_p = cfg['cout_p']
    cin_p = cfg['cin_p']
    has_proj = cfg['has_proj']
    pre_gathered = cfg['pre_gathered']
    id_off = cfg['id_off']        # lane offset of the identity/proj slab
    x_is_bf16 = cfg['x_is_bf16']

    def kernel(mask_ref, x_ref, w1_ref, s1_ref, b1_ref, w2_ref, s2_ref, b2_ref,
               *rest):
        if has_proj:
            w3_ref, s3_ref, b3_ref = rest[:3]
            rest = rest[3:]
        o_ref, he_ref = rest

        # ---------------- conv1: accumulate 9 MXU passes (or 1 big-K pass) ---
        if pre_gathered:
            # stride-2: taps were gathered in XLA -> conv1 is a 1x1 conv.
            acc1 = jnp.dot(w1_ref[...], x_ref[0, 0, :, :LH_pad],
                           preferred_element_type=jnp.float32)
        else:
            acc1 = None
            for t, (dh, dw) in enumerate(_TAPS):
                s = dh * Wp + dw
                xs = x_ref[0, 0, :, s:s + LH_pad]
                if not x_is_bf16:
                    xs = xs.astype(jnp.bfloat16)
                part = jnp.dot(w1_ref[t], xs,
                               preferred_element_type=jnp.float32)
                acc1 = part if acc1 is None else acc1 + part

        # BN1 + ReLU + validity mask (junk lanes / halo rows / ragged rows),
        # written directly into the bf16 padded h1 buffer (shifted by 1 lane so
        # the masked junk lanes become conv2's left/right zero padding).
        h1 = jnp.maximum(acc1 * s1_ref[...] + b1_ref[...], 0.0) * mask_ref[0]
        he_ref[:, 0:1] = jnp.zeros((mid_p, 1), jnp.bfloat16)
        he_ref[:, 1:1 + LH_pad] = h1.astype(jnp.bfloat16)
        if 1 + LH_pad < EH:
            he_ref[:, 1 + LH_pad:] = jnp.zeros((mid_p, EH - 1 - LH_pad),
                                               jnp.bfloat16)

        # ---------------- conv2: 9 accumulating MXU passes from bf16 h1 ------
        acc2 = None
        for t, (dh, dw) in enumerate(_TAPS):
            s = dh * Wp + dw
            part = jnp.dot(w2_ref[t], he_ref[:, s:s + LT_pad],
                           preferred_element_type=jnp.float32)
            acc2 = part if acc2 is None else acc2 + part
        y2 = acc2 * s2_ref[...] + b2_ref[...]                       # BN2

        # ---------------- identity (optional 1x1 proj + BN3) + residual ------
        if has_proj:
            if pre_gathered:
                xi = x_ref[0, 0, 4 * cin_p:5 * cin_p, id_off:id_off + LT_pad]
            else:
                xi = x_ref[0, 0, :, id_off:id_off + LT_pad]
            ident = (jnp.dot(w3_ref[...], xi,
                             preferred_element_type=jnp.float32)
                     * s3_ref[...] + b3_ref[...])
        else:
            ident = x_ref[0, 0, :cout_p, id_off:id_off + LT_pad]    # f32 residual

        o_ref[0, 0] = jnp.maximum(y2 + ident, 0.0).astype(o_ref.dtype)

    return kernel


# ----------------------------------------------------------------------------
# Wrapper: NCHW in / NCHW out, one fused pallas_call over (batch, H-tiles)
# ----------------------------------------------------------------------------
def double_conv_pallas(x, params, *, stride=1):
    """x: (N, Cin, H, W) f32  ->  (N, Cout, H//stride, W//stride) f32."""
    N, cin, H, W = x.shape
    mid = params['w1'].shape[0]
    cout = params['w2'].shape[0]
    has_proj = 'w3' in params
    if stride != 1:
        # Mirrors the PyTorch module: stride != 1 is only shape-valid with the
        # 1x1 projection identity (in_channels != out_channels).
        assert has_proj, "DoubleConv with stride != 1 requires Cin != Cout"

    Ho = (H - 1) // stride + 1
    Wo = (W - 1) // stride + 1
    Wp = Wo + 2

    cin_p = _round_up(cin, 16)        # bf16 sublane tile = 16 rows
    mid_p = _round_up(mid, 16)
    cout_p = _round_up(cout, 8)

    x_is_bf16 = has_proj              # bf16 input whenever identity goes through proj
    x_bytes = 2 if x_is_bf16 else 4
    c1 = 9 * cin_p if stride != 1 else cin_p

    # ---- pick the H-tile so the per-step working set stays small (v7x: 64MiB)
    bytes_per_row = Wp * (c1 * x_bytes + mid_p * (2 + 4) + cout_p * 4 * 3)
    TH = max(4, min(Ho, (6 * 1024 * 1024) // max(1, bytes_per_row)))
    if N == 1 and Ho >= 8:
        TH = min(TH, max(4, Ho // 2))    # >=2 parallel grid steps (v7x: 2 TCs)
    TH = min(TH, Ho)
    n_t = -(-Ho // TH)
    Ho_p = n_t * TH                      # ragged last tile handled by the mask

    LT = TH * Wp
    LT_pad = _round_up(LT, 128)                      # output / conv2 slab
    LH = (TH + 2) * Wp
    LH_pad = _round_up(LH, 128)                      # conv1 slab (incl. h1 halo)
    EH = _round_up(max(1 + LH_pad, 2 * Wp + 2 + LT_pad), 128)

    # ---- activation input: halo-overlapping row tiles in padded-flat layout --
    xc = jnp.pad(x, ((0, 0), (0, cin_p - cin), (0, 0), (0, 0)))
    if x_is_bf16:
        xc = xc.astype(jnp.bfloat16)

    if stride == 1:
        LIN = _round_up(2 * Wp + 2 + LH_pad, 128)
        # doubly padded rows: 1 conv pad + 1 h1-halo on top, same + raggedness below
        xp = jnp.pad(xc, ((0, 0), (0, 0), (2, Ho_p - Ho + 2), (1, 1)))
        xflat = xp.reshape(N, cin_p, (Ho_p + 4) * Wp)
        win = (TH + 4) * Wp
        pre_gathered = False
        id_off = 2 * Wp + 1
    else:
        LIN = _round_up(max(LH_pad, Wp + LT_pad), 128)
        xpad = jnp.pad(xc, ((0, 0), (0, 0), (1, 1), (1, 1)))
        taps = [xpad[:, :, dh:dh + stride * Ho:stride, dw:dw + stride * Wo:stride]
                for dh, dw in _TAPS]
        g = jnp.concatenate(taps, axis=1)                     # (N, 9*cin_p, Ho, Wo)
        g = jnp.pad(g, ((0, 0), (0, 0), (1, Ho_p - Ho + 1), (0, 2)))
        xflat = g.reshape(N, 9 * cin_p, (Ho_p + 2) * Wp)
        win = (TH + 2) * Wp
        pre_gathered = True
        id_off = Wp

    tiles = jnp.stack([xflat[:, :, t * TH * Wp: t * TH * Wp + win]
                       for t in range(n_t)], axis=1)          # (N, n_t, c1, win)
    x_tiles = jnp.pad(tiles, ((0, 0), (0, 0), (0, 0), (0, LIN - win)))

    # ---- precomputed validity mask for h1 (junk lanes, halo rows, ragged rows)
    q_idx = np.arange(LH_pad) // Wp
    w_idx = np.arange(LH_pad) % Wp
    masks_np = np.zeros((n_t, 1, LH_pad), np.float32)
    for t in range(n_t):
        g_row = t * TH - 1 + q_idx
        masks_np[t, 0] = ((q_idx <= TH + 1) & (g_row >= 0) & (g_row < Ho)
                          & (w_idx < Wo)).astype(np.float32)
    masks = jnp.asarray(masks_np)

    # ---- weights reshaped for the per-tap / big-K matmuls --------------------
    w1p = jnp.pad(params['w1'],
                  ((0, mid_p - mid), (0, cin_p - cin), (0, 0), (0, 0)))
    w2p = jnp.pad(params['w2'],
                  ((0, cout_p - cout), (0, mid_p - mid), (0, 0), (0, 0)))
    if pre_gathered:
        w1_k = jnp.transpose(w1p, (0, 2, 3, 1)).reshape(
            mid_p, 9 * cin_p).astype(jnp.bfloat16)
        w1_spec = pl.BlockSpec((mid_p, 9 * cin_p), lambda n, t: (0, 0))
    else:
        w1_k = jnp.transpose(w1p, (2, 3, 0, 1)).reshape(
            9, mid_p, cin_p).astype(jnp.bfloat16)
        w1_spec = pl.BlockSpec((9, mid_p, cin_p), lambda n, t: (0, 0, 0))
    w2_k = jnp.transpose(w2p, (2, 3, 0, 1)).reshape(
        9, cout_p, mid_p).astype(jnp.bfloat16)

    s1p = jnp.pad(params['s1'], ((0, mid_p - mid), (0, 0)))
    b1p = jnp.pad(params['b1'], ((0, mid_p - mid), (0, 0)))
    s2p = jnp.pad(params['s2'], ((0, cout_p - cout), (0, 0)))
    b2p = jnp.pad(params['b2'], ((0, cout_p - cout), (0, 0)))

    args = [masks, x_tiles, w1_k, s1p, b1p, w2_k, s2p, b2p]
    in_specs = [
        pl.BlockSpec((1, 1, LH_pad), lambda n, t: (t, 0, 0)),
        pl.BlockSpec((1, 1, c1, LIN), lambda n, t: (n, t, 0, 0)),
        w1_spec,
        pl.BlockSpec((mid_p, 1), lambda n, t: (0, 0)),
        pl.BlockSpec((mid_p, 1), lambda n, t: (0, 0)),
        pl.BlockSpec((9, cout_p, mid_p), lambda n, t: (0, 0, 0)),
        pl.BlockSpec((cout_p, 1), lambda n, t: (0, 0)),
        pl.BlockSpec((cout_p, 1), lambda n, t: (0, 0)),
    ]
    if has_proj:
        w3p = jnp.pad(params['w3'],
                      ((0, cout_p - cout), (0, cin_p - cin), (0, 0), (0, 0)))
        w3_k = w3p.reshape(cout_p, cin_p).astype(jnp.bfloat16)
        s3p = jnp.pad(params['s3'], ((0, cout_p - cout), (0, 0)))
        b3p = jnp.pad(params['b3'], ((0, cout_p - cout), (0, 0)))
        args += [w3_k, s3p, b3p]
        in_specs += [
            pl.BlockSpec((cout_p, cin_p), lambda n, t: (0, 0)),
            pl.BlockSpec((cout_p, 1), lambda n, t: (0, 0)),
            pl.BlockSpec((cout_p, 1), lambda n, t: (0, 0)),
        ]

    # ---- per-step VMEM estimate -> limit (stays valid on v7x's 64 MiB part) --
    weight_bytes = sum(int(a.size) * a.dtype.itemsize for a in args[2:])
    est = (2 * c1 * LIN * x_bytes + 2 * LH_pad * 4 + mid_p * EH * 2
           + mid_p * LH_pad * 4 + cout_p * LT_pad * 4
           + 2 * cout_p * LT_pad * 4 + 2 * weight_bytes)
    vmem_limit = int(min(64 * 1024 * 1024, max(32 * 1024 * 1024, 3 * est)))

    flops = N * n_t * 2 * (9 * cin_p * mid_p * LH_pad
                           + 9 * mid_p * cout_p * LT_pad
                           + (cin_p * cout_p * LT_pad if has_proj else 0))
    bytes_accessed = int(sum(int(a.size) * a.dtype.itemsize for a in args)
                         + N * n_t * cout_p * LT_pad * 4)

    cfg = dict(Wp=Wp, LH_pad=LH_pad, LT_pad=LT_pad, EH=EH, mid_p=mid_p,
               cout_p=cout_p, cin_p=cin_p, has_proj=has_proj,
               pre_gathered=pre_gathered, id_off=id_off, x_is_bf16=x_is_bf16)
    kernel = _make_double_conv_kernel(cfg)

    y = pl.pallas_call(
        kernel,
        out_shape=jax.ShapeDtypeStruct((N, n_t, cout_p, LT_pad), jnp.float32),
        grid=(N, n_t),
        in_specs=in_specs,
        out_specs=pl.BlockSpec((1, 1, cout_p, LT_pad), lambda n, t: (n, t, 0, 0)),
        scratch_shapes=[pltpu.VMEM((mid_p, EH), jnp.bfloat16)],   # padded h1
        compiler_params=pltpu.CompilerParams(
            dimension_semantics=("parallel", "parallel"),
            vmem_limit_bytes=vmem_limit),
        cost_estimate=pl.CostEstimate(flops=flops, transcendentals=0,
                                      bytes_accessed=bytes_accessed),
    )(*args)

    # TODO(synk): keep downstream blocks in the padded-flat (cout, TH*Wp) layout
    # and only compact at the network boundary to avoid this XLA copy.
    y = y[:, :, :cout, :LT].reshape(N, n_t, cout, TH, Wp)
    y = jnp.transpose(y, (0, 2, 1, 3, 4)).reshape(N, cout, Ho_p, Wp)
    return y[:, :, :Ho, :Wo]


# ----------------------------------------------------------------------------
# Pure JAX/XLA reference (mirrors the PyTorch forward; bf16 rounding of conv
# inputs/weights to match the kernel's MXU precision).
# ----------------------------------------------------------------------------
def _conv2d_ref(x, w, stride=1, padding=1):
    return lax.conv_general_dilated(
        x, w, window_strides=(stride, stride),
        padding=((padding, padding), (padding, padding)),
        dimension_numbers=('NCHW', 'OIHW', 'NCHW'))


def double_conv_reference(x, params, *, stride=1, quantize=True):
    q = ((lambda a: a.astype(jnp.bfloat16).astype(jnp.float32))
         if quantize else (lambda a: a))
    s1 = params['s1'].reshape(1, -1, 1, 1); b1 = params['b1'].reshape(1, -1, 1, 1)
    s2 = params['s2'].reshape(1, -1, 1, 1); b2 = params['b2'].reshape(1, -1, 1, 1)
    if 'w3' in params:
        s3 = params['s3'].reshape(1, -1, 1, 1)
        b3 = params['b3'].reshape(1, -1, 1, 1)
        identity = _conv2d_ref(q(x), q(params['w3']),
                               stride=stride, padding=0) * s3 + b3
    else:
        identity = x
    h = _conv2d_ref(q(x), q(params['w1']), stride=stride, padding=1) * s1 + b1
    h = jnp.maximum(h, 0.0)
    h = _conv2d_ref(q(h), q(params['w2']), stride=1, padding=1) * s2 + b2
    return jnp.maximum(h + identity, 0.0)


# ----------------------------------------------------------------------------
# Deterministic synthetic parameters (eval-mode BatchNorm folded to scale/bias)
# ----------------------------------------------------------------------------
def init_double_conv(key, cin, cout, mid=None, eps=1e-5):
    if mid is None:
        mid = cout
    ks = jax.random.split(key, 6)

    def conv_w(k, co, ci, kh, kw):
        std = (2.0 / (ci * kh * kw)) ** 0.5
        return std * jax.random.normal(k, (co, ci, kh, kw), jnp.float32)

    def bn(k, c):
        k1, k2, k3, k4 = jax.random.split(k, 4)
        gamma = 1.0 + 0.05 * jax.random.normal(k1, (c,), jnp.float32)
        beta = 0.05 * jax.random.normal(k2, (c,), jnp.float32)
        mean = 0.05 * jax.random.normal(k3, (c,), jnp.float32)
        var = 1.0 + 0.1 * jax.random.uniform(k4, (c,), jnp.float32)
        scale = gamma / jnp.sqrt(var + eps)
        bias = beta - mean * scale
        return scale.reshape(c, 1), bias.reshape(c, 1)

    p = {'w1': conv_w(ks[0], mid, cin, 3, 3)}
    p['s1'], p['b1'] = bn(ks[1], mid)
    p['w2'] = conv_w(ks[2], cout, mid, 3, 3)
    p['s2'], p['b2'] = bn(ks[3], cout)
    if cin != cout:
        p['w3'] = conv_w(ks[4], cout, cin, 1, 1)
        p['s3'], p['b3'] = bn(ks[5], cout)
    return p


# ----------------------------------------------------------------------------
if __name__ == "__main__":
    key = jax.random.PRNGKey(0)
    N, H, W = 2, 16, 16

    configs = [
        dict(cin=4, cout=8, stride=1),   # 1x1-projection identity path
        dict(cin=8, cout=8, stride=1),   # plain f32 identity path
        dict(cin=4, cout=8, stride=2),   # strided conv1 + strided projection
    ]

    fwd = jax.jit(double_conv_pallas, static_argnames=("stride",))

    for i, cfg in enumerate(configs):
        kp, kx = jax.random.split(jax.random.fold_in(key, i))
        params = init_double_conv(kp, cfg['cin'], cfg['cout'])
        x = jax.random.normal(kx, (N, cfg['cin'], H, W), jnp.float32)

        out = fwd(x, params, stride=cfg['stride'])
        jax.block_until_ready(out)

        Ho, Wo = H // cfg['stride'], W // cfg['stride']
        assert out.shape == (N, cfg['cout'], Ho, Wo), out.shape
        assert bool(jnp.all(jnp.isfinite(out)))

        ref = double_conv_reference(x, params, stride=cfg['stride'],
                                    quantize=True)
        err = float(jnp.max(jnp.abs(out - ref)))
        assert err < 2e-2, f"config {cfg}: max abs err {err}"

    print("KERNEL_OK")
</pallas_src>

<mosaic_0001>
module attributes {stable_mosaic.version = 11 : i64} {
  func.func @kernel(%arg0: i32, %arg1: i32, %arg2: memref<1x1x384xf32, #tpu.memory_space<vmem>>, %arg3: memref<1x1x16x512xbf16, #tpu.memory_space<vmem>>, %arg4: memref<9x16x16xbf16, #tpu.memory_space<vmem>>, %arg5: memref<16x1xf32, #tpu.memory_space<vmem>>, %arg6: memref<16x1xf32, #tpu.memory_space<vmem>>, %arg7: memref<9x8x16xbf16, #tpu.memory_space<vmem>>, %arg8: memref<8x1xf32, #tpu.memory_space<vmem>>, %arg9: memref<8x1xf32, #tpu.memory_space<vmem>>, %arg10: memref<8x16xbf16, #tpu.memory_space<vmem>>, %arg11: memref<8x1xf32, #tpu.memory_space<vmem>>, %arg12: memref<8x1xf32, #tpu.memory_space<vmem>>, %arg13: memref<1x1x8x384xf32, #tpu.memory_space<vmem>>, %arg14: memref<16x512xbf16, #tpu.memory_space<vmem>>) attributes {dimension_semantics = [#tpu.dimension_semantics<parallel>, #tpu.dimension_semantics<parallel>], iteration_bounds = array<i64: 2, 1>, scalar_prefetch = 0 : i64, scratch_operands = 1 : i64, tpu.core_type = #tpu.core_type<tc>, window_params = [{transform_indices = @transform_0, window_bounds = array<i64: 1, 1, 384>}, {transform_indices = @transform_1, window_bounds = array<i64: 1, 1, 16, 512>}, {pipeline_mode = #tpu.pipeline_mode<synchronous>, transform_indices = @transform_2, window_bounds = array<i64: 9, 16, 16>}, {pipeline_mode = #tpu.pipeline_mode<synchronous>, transform_indices = @transform_3, window_bounds = array<i64: 16, 1>}, {pipeline_mode = #tpu.pipeline_mode<synchronous>, transform_indices = @transform_4, window_bounds = array<i64: 16, 1>}, {pipeline_mode = #tpu.pipeline_mode<synchronous>, transform_indices = @transform_5, window_bounds = array<i64: 9, 8, 16>}, {pipeline_mode = #tpu.pipeline_mode<synchronous>, transform_indices = @transform_6, window_bounds = array<i64: 8, 1>}, {pipeline_mode = #tpu.pipeline_mode<synchronous>, transform_indices = @transform_7, window_bounds = array<i64: 8, 1>}, {pipeline_mode = #tpu.pipeline_mode<synchronous>, transform_indices = @transform_8, window_bounds = array<i64: 8, 16>}, {pipeline_mode = #tpu.pipeline_mode<synchronous>, transform_indices = @transform_9, window_bounds = array<i64: 8, 1>}, {pipeline_mode = #tpu.pipeline_mode<synchronous>, transform_indices = @transform_10, window_bounds = array<i64: 8, 1>}, {transform_indices = @transform_11, window_bounds = array<i64: 1, 1, 8, 384>}]} {
    %c0 = arith.constant 0 : index
    %c0_0 = arith.constant 0 : index
    %c0_1 = arith.constant 0 : index
    %c0_2 = arith.constant 0 : index
    %0 = vector.load %arg3[%c0, %c0_0, %c0_1, %c0_2] : memref<1x1x16x512xbf16, #tpu.memory_space<vmem>>, vector<1x1x16x384xbf16>
    %1 = vector.shape_cast %0 : vector<1x1x16x384xbf16> to vector<16x384xbf16>
    %c0_3 = arith.constant 0 : index
    %c0_4 = arith.constant 0 : index
    %c0_5 = arith.constant 0 : index
    %2 = vector.load %arg4[%c0_3, %c0_4, %c0_5] : memref<9x16x16xbf16, #tpu.memory_space<vmem>>, vector<1x16x16xbf16>
    %3 = vector.shape_cast %2 : vector<1x16x16xbf16> to vector<16x16xbf16>
    %cst = arith.constant dense<0.000000e+00> : vector<16x384xf32>
    %4 = tpu.matmul %3, %1, %cst {dimension_numbers = #tpu.dot_dimension_numbers<[1], [0], [0], [1], [0, 0, 1, 1], [], []>} : vector<16x16xbf16>, vector<16x384xbf16>, vector<16x384xf32> -> vector<16x384xf32>
    %c0_6 = arith.constant 0 : index
    %c0_7 = arith.constant 0 : index
    %c0_8 = arith.constant 0 : index
    %c1 = arith.constant 1 : index
    %5 = vector.load %arg3[%c0_6, %c0_7, %c0_8, %c1] : memref<1x1x16x512xbf16, #tpu.memory_space<vmem>>, vector<1x1x16x384xbf16>
    %6 = vector.shape_cast %5 : vector<1x1x16x384xbf16> to vector<16x384xbf16>
    %c1_9 = arith.constant 1 : index
    %c0_10 = arith.constant 0 : index
    %c0_11 = arith.constant 0 : index
    %7 = vector.load %arg4[%c1_9, %c0_10, %c0_11] : memref<9x16x16xbf16, #tpu.memory_space<vmem>>, vector<1x16x16xbf16>
    %8 = vector.shape_cast %7 : vector<1x16x16xbf16> to vector<16x16xbf16>
    %cst_12 = arith.constant dense<0.000000e+00> : vector<16x384xf32>
    %9 = tpu.matmul %8, %6, %cst_12 {dimension_numbers = #tpu.dot_dimension_numbers<[1], [0], [0], [1], [0, 0, 1, 1], [], []>} : vector<16x16xbf16>, vector<16x384xbf16>, vector<16x384xf32> -> vector<16x384xf32>
    %10 = arith.addf %4, %9 : vector<16x384xf32>
    %c0_13 = arith.constant 0 : index
    %c0_14 = arith.constant 0 : index
    %c0_15 = arith.constant 0 : index
    %c2 = arith.constant 2 : index
    %11 = vector.load %arg3[%c0_13, %c0_14, %c0_15, %c2] : memref<1x1x16x512xbf16, #tpu.memory_space<vmem>>, vector<1x1x16x384xbf16>
    %12 = vector.shape_cast %11 : vector<1x1x16x384xbf16> to vector<16x384xbf16>
    %c2_16 = arith.constant 2 : index
    %c0_17 = arith.constant 0 : index
    %c0_18 = arith.constant 0 : index
    %13 = vector.load %arg4[%c2_16, %c0_17, %c0_18] : memref<9x16x16xbf16, #tpu.memory_space<vmem>>, vector<1x16x16xbf16>
    %14 = vector.shape_cast %13 : vector<1x16x16xbf16> to vector<16x16xbf16>
    %cst_19 = arith.constant dense<0.000000e+00> : vector<16x384xf32>
    %15 = tpu.matmul %14, %12, %cst_19 {dimension_numbers = #tpu.dot_dimension_numbers<[1], [0], [0], [1], [0, 0, 1, 1], [], []>} : vector<16x16xbf16>, vector<16x384xbf16>, vector<16x384xf32> -> vector<16x384xf32>
    %16 = arith.addf %10, %15 : vector<16x384xf32>
    %c0_20 = arith.constant 0 : index
    %c0_21 = arith.constant 0 : index
    %c0_22 = arith.constant 0 : index
    %c18 = arith.constant 18 : index
    %17 = vector.load %arg3[%c0_20, %c0_21, %c0_22, %c18] : memref<1x1x16x512xbf16, #tpu.memory_space<vmem>>, vector<1x1x16x384xbf16>
    %18 = vector.shape_cast %17 : vector<1x1x16x384xbf16> to vector<16x384xbf16>
    %c3 = arith.constant 3 : index
    %c0_23 = arith.constant 0 : index
    %c0_24 = arith.constant 0 : index
    %19 = vector.load %arg4[%c3, %c0_23, %c0_24] : memref<9x16x16xbf16, #tpu.memory_space<vmem>>, vector<1x16x16xbf16>
    %20 = vector.shape_cast %19 : vector<1x16x16xbf16> to vector<16x16xbf16>
    %cst_25 = arith.constant dense<0.000000e+00> : vector<16x384xf32>
    %21 = tpu.matmul %20, %18, %cst_25 {dimension_numbers = #tpu.dot_dimension_numbers<[1], [0], [0], [1], [0, 0, 1, 1], [], []>} : vector<16x16xbf16>, vector<16x384xbf16>, vector<16x384xf32> -> vector<16x384xf32>
    %22 = arith.addf %16, %21 : vector<16x384xf32>
    %c0_26 = arith.constant 0 : index
    %c0_27 = arith.constant 0 : index
    %c0_28 = arith.constant 0 : index
    %c19 = arith.constant 19 : index
    %23 = vector.load %arg3[%c0_26, %c0_27, %c0_28, %c19] : memref<1x1x16x512xbf16, #tpu.memory_space<vmem>>, vector<1x1x16x384xbf16>
    %24 = vector.shape_cast %23 : vector<1x1x16x384xbf16> to vector<16x384xbf16>
    %c4 = arith.constant 4 : index
    %c0_29 = arith.constant 0 : index
    %c0_30 = arith.constant 0 : index
    %25 = vector.load %arg4[%c4, %c0_29, %c0_30] : memref<9x16x16xbf16, #tpu.memory_space<vmem>>, vector<1x16x16xbf16>
    %26 = vector.shape_cast %25 : vector<1x16x16xbf16> to vector<16x16xbf16>
    %cst_31 = arith.constant dense<0.000000e+00> : vector<16x384xf32>
    %27 = tpu.matmul %26, %24, %cst_31 {dimension_numbers = #tpu.dot_dimension_numbers<[1], [0], [0], [1], [0, 0, 1, 1], [], []>} : vector<16x16xbf16>, vector<16x384xbf16>, vector<16x384xf32> -> vector<16x384xf32>
    %28 = arith.addf %22, %27 : vector<16x384xf32>
    %c0_32 = arith.constant 0 : index
    %c0_33 = arith.constant 0 : index
    %c0_34 = arith.constant 0 : index
    %c20 = arith.constant 20 : index
    %29 = vector.load %arg3[%c0_32, %c0_33, %c0_34, %c20] : memref<1x1x16x512xbf16, #tpu.memory_space<vmem>>, vector<1x1x16x384xbf16>
    %30 = vector.shape_cast %29 : vector<1x1x16x384xbf16> to vector<16x384xbf16>
    %c5 = arith.constant 5 : index
    %c0_35 = arith.constant 0 : index
    %c0_36 = arith.constant 0 : index
    %31 = vector.load %arg4[%c5, %c0_35, %c0_36] : memref<9x16x16xbf16, #tpu.memory_space<vmem>>, vector<1x16x16xbf16>
    %32 = vector.shape_cast %31 : vector<1x16x16xbf16> to vector<16x16xbf16>
    %cst_37 = arith.constant dense<0.000000e+00> : vector<16x384xf32>
    %33 = tpu.matmul %32, %30, %cst_37 {dimension_numbers = #tpu.dot_dimension_numbers<[1], [0], [0], [1], [0, 0, 1, 1], [], []>} : vector<16x16xbf16>, vector<16x384xbf16>, vector<16x384xf32> -> vector<16x384xf32>
    %34 = arith.addf %28, %33 : vector<16x384xf32>
    %c0_38 = arith.constant 0 : index
    %c0_39 = arith.constant 0 : index
    %c0_40 = arith.constant 0 : index
    %c36 = arith.constant 36 : index
    %35 = vector.load %arg3[%c0_38, %c0_39, %c0_40, %c36] : memref<1x1x16x512xbf16, #tpu.memory_space<vmem>>, vector<1x1x16x384xbf16>
    %36 = vector.shape_cast %35 : vector<1x1x16x384xbf16> to vector<16x384xbf16>
    %c6 = arith.constant 6 : index
    %c0_41 = arith.constant 0 : index
    %c0_42 = arith.constant 0 : index
    %37 = vector.load %arg4[%c6, %c0_41, %c0_42] : memref<9x16x16xbf16, #tpu.memory_space<vmem>>, vector<1x16x16xbf16>
    %38 = vector.shape_cast %37 : vector<1x16x16xbf16> to vector<16x16xbf16>
    %cst_43 = arith.constant dense<0.000000e+00> : vector<16x384xf32>
    %39 = tpu.matmul %38, %36, %cst_43 {dimension_numbers = #tpu.dot_dimension_numbers<[1], [0], [0], [1], [0, 0, 1, 1], [], []>} : vector<16x16xbf16>, vector<16x384xbf16>, vector<16x384xf32> -> vector<16x384xf32>
    %40 = arith.addf %34, %39 : vector<16x384xf32>
    %c0_44 = arith.constant 0 : index
    %c0_45 = arith.constant 0 : index
    %c0_46 = arith.constant 0 : index
    %c37 = arith.constant 37 : index
    %41 = vector.load %arg3[%c0_44, %c0_45, %c0_46, %c37] : memref<1x1x16x512xbf16, #tpu.memory_space<vmem>>, vector<1x1x16x384xbf16>
    %42 = vector.shape_cast %41 : vector<1x1x16x384xbf16> to vector<16x384xbf16>
    %c7 = arith.constant 7 : index
    %c0_47 = arith.constant 0 : index
    %c0_48 = arith.constant 0 : index
    %43 = vector.load %arg4[%c7, %c0_47, %c0_48] : memref<9x16x16xbf16, #tpu.memory_space<vmem>>, vector<1x16x16xbf16>
    %44 = vector.shape_cast %43 : vector<1x16x16xbf16> to vector<16x16xbf16>
    %cst_49 = arith.constant dense<0.000000e+00> : vector<16x384xf32>
    %45 = tpu.matmul %44, %42, %cst_49 {dimension_numbers = #tpu.dot_dimension_numbers<[1], [0], [0], [1], [0, 0, 1, 1], [], []>} : vector<16x16xbf16>, vector<16x384xbf16>, vector<16x384xf32> -> vector<16x384xf32>
    %46 = arith.addf %40, %45 : vector<16x384xf32>
    %c0_50 = arith.constant 0 : index
    %c0_51 = arith.constant 0 : index
    %c0_52 = arith.constant 0 : index
    %c38 = arith.constant 38 : index
    %47 = vector.load %arg3[%c0_50, %c0_51, %c0_52, %c38] : memref<1x1x16x512xbf16, #tpu.memory_space<vmem>>, vector<1x1x16x384xbf16>
    %48 = vector.shape_cast %47 : vector<1x1x16x384xbf16> to vector<16x384xbf16>
    %c8 = arith.constant 8 : index
    %c0_53 = arith.constant 0 : index
    %c0_54 = arith.constant 0 : index
    %49 = vector.load %arg4[%c8, %c0_53, %c0_54] : memref<9x16x16xbf16, #tpu.memory_space<vmem>>, vector<1x16x16xbf16>
    %50 = vector.shape_cast %49 : vector<1x16x16xbf16> to vector<16x16xbf16>
    %cst_55 = arith.constant dense<0.000000e+00> : vector<16x384xf32>
    %51 = tpu.matmul %50, %48, %cst_55 {dimension_numbers = #tpu.dot_dimension_numbers<[1], [0], [0], [1], [0, 0, 1, 1], [], []>} : vector<16x16xbf16>, vector<16x384xbf16>, vector<16x384xf32> -> vector<16x384xf32>
    %52 = arith.addf %46, %51 : vector<16x384xf32>
    %c0_56 = arith.constant 0 : index
    %c0_57 = arith.constant 0 : index
    %53 = vector.load %arg5[%c0_56, %c0_57] : memref<16x1xf32, #tpu.memory_space<vmem>>, vector<16x1xf32>
    %54 = vector.broadcast %53 : vector<16x1xf32> to vector<16x384xf32>
    %55 = arith.mulf %52, %54 : vector<16x384xf32>
    %c0_58 = arith.constant 0 : index
    %c0_59 = arith.constant 0 : index
    %56 = vector.load %arg6[%c0_58, %c0_59] : memref<16x1xf32, #tpu.memory_space<vmem>>, vector<16x1xf32>
    %57 = vector.broadcast %56 : vector<16x1xf32> to vector<16x384xf32>
    %58 = arith.addf %55, %57 : vector<16x384xf32>
    %cst_60 = arith.constant 0.000000e+00 : f32
    %59 = vector.broadcast %cst_60 : f32 to vector<16x384xf32>
    %60 = arith.maximumf %58, %59 : vector<16x384xf32>
    %c0_61 = arith.constant 0 : index
    %c0_62 = arith.constant 0 : index
    %c0_63 = arith.constant 0 : index
    %61 = vector.load %arg2[%c0_61, %c0_62, %c0_63] : memref<1x1x384xf32, #tpu.memory_space<vmem>>, vector<1x1x384xf32>
    %62 = vector.shape_cast %61 : vector<1x1x384xf32> to vector<1x384xf32>
    %63 = vector.broadcast %62 : vector<1x384xf32> to vector<16x384xf32>
    %64 = arith.mulf %60, %63 : vector<16x384xf32>
    %cst_64 = arith.constant 0.000000e+00 : bf16
    %65 = vector.broadcast %cst_64 : bf16 to vector<16x1xbf16>
    %c0_65 = arith.constant 0 : index
    %c0_66 = arith.constant 0 : index
    %66 = vector.load %arg14[%c0_65, %c0_66] : memref<16x512xbf16, #tpu.memory_space<vmem>>, vector<16x1xbf16>
    tpu.vector_store %arg14[%c0_65, %c0_66], %65 {strides = array<i32>} : memref<16x512xbf16, #tpu.memory_space<vmem>>, vector<16x1xbf16>,
    %67 = arith.truncf %64 : vector<16x384xf32> to vector<16x384xbf16>
    %c0_67 = arith.constant 0 : index
    %c1_68 = arith.constant 1 : index
    %68 = vector.load %arg14[%c0_67, %c1_68] : memref<16x512xbf16, #tpu.memory_space<vmem>>, vector<16x384xbf16>
    tpu.vector_store %arg14[%c0_67, %c1_68], %67 {strides = array<i32>} : memref<16x512xbf16, #tpu.memory_space<vmem>>, vector<16x384xbf16>,
    %cst_69 = arith.constant 0.000000e+00 : bf16
    %69 = vector.broadcast %cst_69 : bf16 to vector<16x127xbf16>
    %c0_70 = arith.constant 0 : index
    %c385 = arith.constant 385 : index
    %70 = vector.load %arg14[%c0_70, %c385] : memref<16x512xbf16, #tpu.memory_space<vmem>>, vector<16x127xbf16>
    tpu.vector_store %arg14[%c0_70, %c385], %69 {strides = array<i32>} : memref<16x512xbf16, #tpu.memory_space<vmem>>, vector<16x127xbf16>,
    %c0_71 = arith.constant 0 : index
    %c0_72 = arith.constant 0 : index
    %c0_73 = arith.constant 0 : index
    %71 = vector.load %arg7[%c0_71, %c0_72, %c0_73] : memref<9x8x16xbf16, #tpu.memory_space<vmem>>, vector<1x8x16xbf16>
    %72 = vector.shape_cast %71 : vector<1x8x16xbf16> to vector<8x16xbf16>
    %c0_74 = arith.constant 0 : index
    %c0_75 = arith.constant 0 : index
    %73 = vector.load %arg14[%c0_74, %c0_75] : memref<16x512xbf16, #tpu.memory_space<vmem>>, vector<16x384xbf16>
    %cst_76 = arith.constant dense<0.000000e+00> : vector<8x384xf32>
    %74 = tpu.matmul %72, %73, %cst_76 {dimension_numbers = #tpu.dot_dimension_numbers<[1], [0], [0], [1], [0, 0, 1, 1], [], []>} : vector<8x16xbf16>, vector<16x384xbf16>, vector<8x384xf32> -> vector<8x384xf32>
    %c1_77 = arith.constant 1 : index
    %c0_78 = arith.constant 0 : index
    %c0_79 = arith.constant 0 : index
    %75 = vector.load %arg7[%c1_77, %c0_78, %c0_79] : memref<9x8x16xbf16, #tpu.memory_space<vmem>>, vector<1x8x16xbf16>
    %76 = vector.shape_cast %75 : vector<1x8x16xbf16> to vector<8x16xbf16>
    %c0_80 = arith.constant 0 : index
    %c1_81 = arith.constant 1 : index
    %77 = vector.load %arg14[%c0_80, %c1_81] : memref<16x512xbf16, #tpu.memory_space<vmem>>, vector<16x384xbf16>
    %cst_82 = arith.constant dense<0.000000e+00> : vector<8x384xf32>
    %78 = tpu.matmul %76, %77, %cst_82 {dimension_numbers = #tpu.dot_dimension_numbers<[1], [0], [0], [1], [0, 0, 1, 1], [], []>} : vector<8x16xbf16>, vector<16x384xbf16>, vector<8x384xf32> -> vector<8x384xf32>
    %79 = arith.addf %74, %78 : vector<8x384xf32>
    %c2_83 = arith.constant 2 : index
    %c0_84 = arith.constant 0 : index
    %c0_85 = arith.constant 0 : index
    %80 = vector.load %arg7[%c2_83, %c0_84, %c0_85] : memref<9x8x16xbf16, #tpu.memory_space<vmem>>, vector<1x8x16xbf16>
    %81 = vector.shape_cast %80 : vector<1x8x16xbf16> to vector<8x16xbf16>
    %c0_86 = arith.constant 0 : index
    %c2_87 = arith.constant 2 : index
    %82 = vector.load %arg14[%c0_86, %c2_87] : memref<16x512xbf16, #tpu.memory_space<vmem>>, vector<16x384xbf16>
    %cst_88 = arith.constant dense<0.000000e+00> : vector<8x384xf32>
    %83 = tpu.matmul %81, %82, %cst_88 {dimension_numbers = #tpu.dot_dimension_numbers<[1], [0], [0], [1], [0, 0, 1, 1], [], []>} : vector<8x16xbf16>, vector<16x384xbf16>, vector<8x384xf32> -> vector<8x384xf32>
    %84 = arith.addf %79, %83 : vector<8x384xf32>
    %c3_89 = arith.constant 3 : index
    %c0_90 = arith.constant 0 : index
    %c0_91 = arith.constant 0 : index
    %85 = vector.load %arg7[%c3_89, %c0_90, %c0_91] : memref<9x8x16xbf16, #tpu.memory_space<vmem>>, vector<1x8x16xbf16>
    %86 = vector.shape_cast %85 : vector<1x8x16xbf16> to vector<8x16xbf16>
    %c0_92 = arith.constant 0 : index
    %c18_93 = arith.constant 18 : index
    %87 = vector.load %arg14[%c0_92, %c18_93] : memref<16x512xbf16, #tpu.memory_space<vmem>>, vector<16x384xbf16>
    %cst_94 = arith.constant dense<0.000000e+00> : vector<8x384xf32>
    %88 = tpu.matmul %86, %87, %cst_94 {dimension_numbers = #tpu.dot_dimension_numbers<[1], [0], [0], [1], [0, 0, 1, 1], [], []>} : vector<8x16xbf16>, vector<16x384xbf16>, vector<8x384xf32> -> vector<8x384xf32>
    %89 = arith.addf %84, %88 : vector<8x384xf32>
    %c4_95 = arith.constant 4 : index
    %c0_96 = arith.constant 0 : index
    %c0_97 = arith.constant 0 : index
    %90 = vector.load %arg7[%c4_95, %c0_96, %c0_97] : memref<9x8x16xbf16, #tpu.memory_space<vmem>>, vector<1x8x16xbf16>
    %91 = vector.shape_cast %90 : vector<1x8x16xbf16> to vector<8x16xbf16>
    %c0_98 = arith.constant 0 : index
    %c19_99 = arith.constant 19 : index
    %92 = vector.load %arg14[%c0_98, %c19_99] : memref<16x512xbf16, #tpu.memory_space<vmem>>, vector<16x384xbf16>
    %cst_100 = arith.constant dense<0.000000e+00> : vector<8x384xf32>
    %93 = tpu.matmul %91, %92, %cst_100 {dimension_numbers = #tpu.dot_dimension_numbers<[1], [0], [0], [1], [0, 0, 1, 1], [], []>} : vector<8x16xbf16>, vector<16x384xbf16>, vector<8x384xf32> -> vector<8x384xf32>
    %94 = arith.addf %89, %93 : vector<8x384xf32>
    %c5_101 = arith.constant 5 : index
    %c0_102 = arith.constant 0 : index
    %c0_103 = arith.constant 0 : index
    %95 = vector.load %arg7[%c5_101, %c0_102, %c0_103] : memref<9x8x16xbf16, #tpu.memory_space<vmem>>, vector<1x8x16xbf16>
    %96 = vector.shape_cast %95 : vector<1x8x16xbf16> to vector<8x16xbf16>
    %c0_104 = arith.constant 0 : index
    %c20_105 = arith.constant 20 : index
    %97 = vector.load %arg14[%c0_104, %c20_105] : memref<16x512xbf16, #tpu.memory_space<vmem>>, vector<16x384xbf16>
    %cst_106 = arith.constant dense<0.000000e+00> : vector<8x384xf32>
    %98 = tpu.matmul %96, %97, %cst_106 {dimension_numbers = #tpu.dot_dimension_numbers<[1], [0], [0], [1], [0, 0, 1, 1], [], []>} : vector<8x16xbf16>, vector<16x384xbf16>, vector<8x384xf32> -> vector<8x384xf32>
    %99 = arith.addf %94, %98 : vector<8x384xf32>
    %c6_107 = arith.constant 6 : index
    %c0_108 = arith.constant 0 : index
    %c0_109 = arith.constant 0 : index
    %100 = vector.load %arg7[%c6_107, %c0_108, %c0_109] : memref<9x8x16xbf16, #tpu.memory_space<vmem>>, vector<1x8x16xbf16>
    %101 = vector.shape_cast %100 : vector<1x8x16xbf16> to vector<8x16xbf16>
    %c0_110 = arith.constant 0 : index
    %c36_111 = arith.constant 36 : index
    %102 = vector.load %arg14[%c0_110, %c36_111] : memref<16x512xbf16, #tpu.memory_space<vmem>>, vector<16x384xbf16>
    %cst_112 = arith.constant dense<0.000000e+00> : vector<8x384xf32>
    %103 = tpu.matmul %101, %102, %cst_112 {dimension_numbers = #tpu.dot_dimension_numbers<[1], [0], [0], [1], [0, 0, 1, 1], [], []>} : vector<8x16xbf16>, vector<16x384xbf16>, vector<8x384xf32> -> vector<8x384xf32>
    %104 = arith.addf %99, %103 : vector<8x384xf32>
    %c7_113 = arith.constant 7 : index
    %c0_114 = arith.constant 0 : index
    %c0_115 = arith.constant 0 : index
    %105 = vector.load %arg7[%c7_113, %c0_114, %c0_115] : memref<9x8x16xbf16, #tpu.memory_space<vmem>>, vector<1x8x16xbf16>
    %106 = vector.shape_cast %105 : vector<1x8x16xbf16> to vector<8x16xbf16>
    %c0_116 = arith.constant 0 : index
    %c37_117 = arith.constant 37 : index
    %107 = vector.load %arg14[%c0_116, %c37_117] : memref<16x512xbf16, #tpu.memory_space<vmem>>, vector<16x384xbf16>
    %cst_118 = arith.constant dense<0.000000e+00> : vector<8x384xf32>
    %108 = tpu.matmul %106, %107, %cst_118 {dimension_numbers = #tpu.dot_dimension_numbers<[1], [0], [0], [1], [0, 0, 1, 1], [], []>} : vector<8x16xbf16>, vector<16x384xbf16>, vector<8x384xf32> -> vector<8x384xf32>
    %109 = arith.addf %104, %108 : vector<8x384xf32>
    %c8_119 = arith.constant 8 : index
    %c0_120 = arith.constant 0 : index
    %c0_121 = arith.constant 0 : index
    %110 = vector.load %arg7[%c8_119, %c0_120, %c0_121] : memref<9x8x16xbf16, #tpu.memory_space<vmem>>, vector<1x8x16xbf16>
    %111 = vector.shape_cast %110 : vector<1x8x16xbf16> to vector<8x16xbf16>
    %c0_122 = arith.constant 0 : index
    %c38_123 = arith.constant 38 : index
    %112 = vector.load %arg14[%c0_122, %c38_123] : memref<16x512xbf16, #tpu.memory_space<vmem>>, vector<16x384xbf16>
    %cst_124 = arith.constant dense<0.000000e+00> : vector<8x384xf32>
    %113 = tpu.matmul %111, %112, %cst_124 {dimension_numbers = #tpu.dot_dimension_numbers<[1], [0], [0], [1], [0, 0, 1, 1], [], []>} : vector<8x16xbf16>, vector<16x384xbf16>, vector<8x384xf32> -> vector<8x384xf32>
    %114 = arith.addf %109, %113 : vector<8x384xf32>
    %c0_125 = arith.constant 0 : index
    %c0_126 = arith.constant 0 : index
    %115 = vector.load %arg8[%c0_125, %c0_126] : memref<8x1xf32, #tpu.memory_space<vmem>>, vector<8x1xf32>
    %116 = vector.broadcast %115 : vector<8x1xf32> to vector<8x384xf32>
    %117 = arith.mulf %114, %116 : vector<8x384xf32>
    %c0_127 = arith.constant 0 : index
    %c0_128 = arith.constant 0 : index
    %118 = vector.load %arg9[%c0_127, %c0_128] : memref<8x1xf32, #tpu.memory_space<vmem>>, vector<8x1xf32>
    %119 = vector.broadcast %118 : vector<8x1xf32> to vector<8x384xf32>
    %120 = arith.addf %117, %119 : vector<8x384xf32>
    %c0_129 = arith.constant 0 : index
    %c0_130 = arith.constant 0 : index
    %c0_131 = arith.constant 0 : index
    %c37_132 = arith.constant 37 : index
    %121 = vector.load %arg3[%c0_129, %c0_130, %c0_131, %c37_132] : memref<1x1x16x512xbf16, #tpu.memory_space<vmem>>, vector<1x1x16x384xbf16>
    %122 = vector.shape_cast %121 : vector<1x1x16x384xbf16> to vector<16x384xbf16>
    %c0_133 = arith.constant 0 : index
    %c0_134 = arith.constant 0 : index
    %123 = vector.load %arg10[%c0_133, %c0_134] : memref<8x16xbf16, #tpu.memory_space<vmem>>, vector<8x16xbf16>
    %cst_135 = arith.constant dense<0.000000e+00> : vector<8x384xf32>
    %124 = tpu.matmul %123, %122, %cst_135 {dimension_numbers = #tpu.dot_dimension_numbers<[1], [0], [0], [1], [0, 0, 1, 1], [], []>} : vector<8x16xbf16>, vector<16x384xbf16>, vector<8x384xf32> -> vector<8x384xf32>
    %c0_136 = arith.constant 0 : index
    %c0_137 = arith.constant 0 : index
    %125 = vector.load %arg11[%c0_136, %c0_137] : memref<8x1xf32, #tpu.memory_space<vmem>>, vector<8x1xf32>
    %126 = vector.broadcast %125 : vector<8x1xf32> to vector<8x384xf32>
    %127 = arith.mulf %124, %126 : vector<8x384xf32>
    %c0_138 = arith.constant 0 : index
    %c0_139 = arith.constant 0 : index
    %128 = vector.load %arg12[%c0_138, %c0_139] : memref<8x1xf32, #tpu.memory_space<vmem>>, vector<8x1xf32>
    %129 = vector.broadcast %128 : vector<8x1xf32> to vector<8x384xf32>
    %130 = arith.addf %127, %129 : vector<8x384xf32>
    %131 = arith.addf %120, %130 : vector<8x384xf32>
    %cst_140 = arith.constant 0.000000e+00 : f32
    %132 = vector.broadcast %cst_140 : f32 to vector<8x384xf32>
    %133 = arith.maximumf %131, %132 : vector<8x384xf32>
    %c0_141 = arith.constant 0 : index
    %c0_142 = arith.constant 0 : index
    %c0_143 = arith.constant 0 : index
    %c0_144 = arith.constant 0 : index
    %134 = vector.load %arg13[%c0_141, %c0_142, %c0_143, %c0_144] : memref<1x1x8x384xf32, #tpu.memory_space<vmem>>, vector<1x1x8x384xf32>
    %135 = vector.shape_cast %134 : vector<1x1x8x384xf32> to vector<8x384xf32>
    %136 = vector.shape_cast %133 : vector<8x384xf32> to vector<1x1x8x384xf32>
    tpu.vector_store %arg13[%c0_141, %c0_142, %c0_143, %c0_144], %136 {strides = array<i32>} : memref<1x1x8x384xf32, #tpu.memory_space<vmem>>, vector<1x1x8x384xf32>,
    return
  }
  func.func @transform_0(%arg0: i32, %arg1: i32) -> (i32, i32, i32) {
    %c0_i32 = arith.constant 0 : i32
    %c0_i32_0 = arith.constant 0 : i32
    %c0_i32_1 = arith.constant 0 : i32
    return %arg1, %c0_i32, %c0_i32_0 : i32, i32, i32
  }
  func.func @transform_1(%arg0: i32, %arg1: i32) -> (i32, i32, i32, i32) {
    %c0_i32 = arith.constant 0 : i32
    %c0_i32_0 = arith.constant 0 : i32
    %c0_i32_1 = arith.constant 0 : i32
    return %arg0, %arg1, %c0_i32, %c0_i32_0 : i32, i32, i32, i32
  }
  func.func @transform_2(%arg0: i32, %arg1: i32) -> (i32, i32, i32) {
    %c0_i32 = arith.constant 0 : i32
    %c0_i32_0 = arith.constant 0 : i32
    %c0_i32_1 = arith.constant 0 : i32
    %c0_i32_2 = arith.constant 0 : i32
    return %c0_i32, %c0_i32_0, %c0_i32_1 : i32, i32, i32
  }
  func.func @transform_3(%arg0: i32, %arg1: i32) -> (i32, i32) {
    %c0_i32 = arith.constant 0 : i32
    %c0_i32_0 = arith.constant 0 : i32
    %c0_i32_1 = arith.constant 0 : i32
    return %c0_i32, %c0_i32_0 : i32, i32
  }
  func.func @transform_4(%arg0: i32, %arg1: i32) -> (i32, i32) {
    %c0_i32 = arith.constant 0 : i32
    %c0_i32_0 = arith.constant 0 : i32
    %c0_i32_1 = arith.constant 0 : i32
    return %c0_i32, %c0_i32_0 : i32, i32
  }
  func.func @transform_5(%arg0: i32, %arg1: i32) -> (i32, i32, i32) {
    %c0_i32 = arith.constant 0 : i32
    %c0_i32_0 = arith.constant 0 : i32
    %c0_i32_1 = arith.constant 0 : i32
    %c0_i32_2 = arith.constant 0 : i32
    return %c0_i32, %c0_i32_0, %c0_i32_1 : i32, i32, i32
  }
  func.func @transform_6(%arg0: i32, %arg1: i32) -> (i32, i32) {
    %c0_i32 = arith.constant 0 : i32
    %c0_i32_0 = arith.constant 0 : i32
    %c0_i32_1 = arith.constant 0 : i32
    return %c0_i32, %c0_i32_0 : i32, i32
  }
  func.func @transform_7(%arg0: i32, %arg1: i32) -> (i32, i32) {
    %c0_i32 = arith.constant 0 : i32
    %c0_i32_0 = arith.constant 0 : i32
    %c0_i32_1 = arith.constant 0 : i32
    return %c0_i32, %c0_i32_0 : i32, i32
  }
  func.func @transform_8(%arg0: i32, %arg1: i32) -> (i32, i32) {
    %c0_i32 = arith.constant 0 : i32
    %c0_i32_0 = arith.constant 0 : i32
    %c0_i32_1 = arith.constant 0 : i32
    return %c0_i32, %c0_i32_0 : i32, i32
  }
  func.func @transform_9(%arg0: i32, %arg1: i32) -> (i32, i32) {
    %c0_i32 = arith.constant 0 : i32
    %c0_i32_0 = arith.constant 0 : i32
    %c0_i32_1 = arith.constant 0 : i32
    return %c0_i32, %c0_i32_0 : i32, i32
  }
  func.func @transform_10(%arg0: i32, %arg1: i32) -> (i32, i32) {
    %c0_i32 = arith.constant 0 : i32
    %c0_i32_0 = arith.constant 0 : i32
    %c0_i32_1 = arith.constant 0 : i32
    return %c0_i32, %c0_i32_0 : i32, i32
  }
  func.func @transform_11(%arg0: i32, %arg1: i32) -> (i32, i32, i32, i32) {
    %c0_i32 = arith.constant 0 : i32
    %c0_i32_0 = arith.constant 0 : i32
    %c0_i32_1 = arith.constant 0 : i32
    return %arg0, %arg1, %c0_i32, %c0_i32_0 : i32, i32, i32, i32
  }
}

</mosaic_0001>

<llo_original>
// kernel: double_conv_pallas.1
$region0: #{double_conv_pallas.1}
  #allocation0 [shape = 'u32[]', space=smem, size = 0x4, offset = 0x4, fixed_abs, tag = 'smem constant byte address 0x4 - core index']
  #allocation1 [shape = 'u32[72,128]{1,0:T(1,128)}', space=vmem, size = 0x9000, scoped, tag = 'internal scratch']
  #allocation2 [shape = 'bf16[16,512]{1,0:T(8,128)(2,1)}', space=vmem, size = 0x4000, scoped, tag = 'scratch operand']
  %s0 = inlined_call_operand.vmem [shape: f32[1,1,384], index: 0, kind: input, shape index: {}]
  %s1 = inlined_call_operand.vmem [shape: bf16[2,1,16,512], index: 1, kind: input, shape index: {}]
  %s2 = inlined_call_operand.vmem [shape: bf16[9,16,16], index: 2, kind: input, shape index: {}]
  %s3 = inlined_call_operand.vmem [shape: f32[16,1], index: 3, kind: input, shape index: {}]
  %s4 = inlined_call_operand.vmem [shape: f32[16,1], index: 4, kind: input, shape index: {}]
  %s5 = inlined_call_operand.vmem [shape: bf16[9,8,16], index: 5, kind: input, shape index: {}]
  %s6 = inlined_call_operand.vmem [shape: f32[8,1], index: 6, kind: input, shape index: {}]
  %s7 = inlined_call_operand.vmem [shape: f32[8,1], index: 7, kind: input, shape index: {}]
  %s8 = inlined_call_operand.vmem [shape: bf16[8,16], index: 8, kind: input, shape index: {}]
  %s9 = inlined_call_operand.vmem [shape: f32[8,1], index: 9, kind: input, shape index: {}]
  %s10 = inlined_call_operand.vmem [shape: f32[8,1], index: 10, kind: input, shape index: {}]
  %s11 = inlined_call_operand.vmem [shape: f32[2,1,8,384], index: 11, kind: output, shape index: {}]
  %s12 = sld [smem:[#allocation0]]
  $region77: #{double_conv_pallas.1} parent=0
    _
  %s14 = ssub.s32 1, %s12
  %s15 = scalar_select 0, %s14, %s12
  loop: start=0, step=1, limit=4
  $region2: #{double_conv_pallas.1} parent=0 // loop_pre_header
    _
  $region3: #{double_conv_pallas.1} parent=0 // loop_header
    %s17 = sphi 0, %s21
    %p18 = scmp.ge.s32.totalorder %s17, 4
    %s24 = sphi 0, %s36
    %s25 = sphi 0, %s32
    %s26 = sphi 0, %s24
    %s27 = sphi 0, %s25
    %s28 = sphi 0, %s26
    %s29 = sphi 0, %s27
    %s39 = sphi 0, %s41
    %s42 = sphi 0, %s39
    %s43 = sphi 0, %s42
    %s59 = sphi 0, %s43
    %s67 = sphi 0, %s69
    %s70 = sphi 0, %s67
    %s71 = sphi 0, %s70
    %s87 = sphi 0, %s71
    %s91 = sphi 0, %s91
    %s93 = sphi 0, %s91
    %s94 = sphi 0, %s93
    %s108 = sphi 0, %s94
    %s112 = sphi 0, %s112
    %s114 = sphi 0, %s112
    %s115 = sphi 0, %s114
    %s129 = sphi 0, %s115
    %s133 = sphi 0, %s133
    %s135 = sphi 0, %s133
    %s136 = sphi 0, %s135
    %s150 = sphi 0, %s136
    %s154 = sphi 0, %s154
    %s156 = sphi 0, %s154
    %s157 = sphi 0, %s156
    %s171 = sphi 0, %s157
    %s175 = sphi 0, %s175
    %s177 = sphi 0, %s175
    %s178 = sphi 0, %s177
    %s192 = sphi 0, %s178
    %s196 = sphi 0, %s196
    %s198 = sphi 0, %s196
    %s199 = sphi 0, %s198
    %s213 = sphi 0, %s199
    %s217 = sphi 0, %s217
    %s219 = sphi 0, %s217
    %s220 = sphi 0, %s219
    %s234 = sphi 0, %s220
    %s238 = sphi 0, %s238
    %s240 = sphi 0, %s238
    %s241 = sphi 0, %s240
    %s255 = sphi 0, %s241
    %s259 = sphi 0, %s259
    %s261 = sphi 0, %s259
    %s262 = sphi 0, %s261
    %s276 = sphi 0, %s262
    %s284 = sphi 0, %s286
    %s287 = sphi 0, %s284
    %s288 = sphi 0, %s287
    %s304 = sphi 0, %s288
  $region4: #{double_conv_pallas.1} parent=0 // loop_header_branch
    %20 = sbr.rel (%p18) target = $region8
  $region5: #{double_conv_pallas.1} parent=0 // loop_body
    %s22 = ssub.s32 %s17, 1
    %s23 = ssub.s32 %s17, 2
    %s30 = sadd.s32 1, %s25
    %p31 = scmp.ge.s32.totalorder %s30, 1
    %s32 = scalar_select %p31, 0, %s30
    %s33 = sadd.s32 1, %s24
    %s34 = scalar_select %p31, %s33, %s24
    %p35 = scmp.ge.s32.totalorder %s34, 2
    %s36 = scalar_select %p35, 0, %s34
    %s37 = ssub.s32 %s25, %s32
    %p38 = scmp.eq.s32.totalorder %s37, 0
    %s40 = sadd.s32 %s39, 1
    %s41 = scalar_select %p38, %s39, %s40
    %p44 = pneg %p38
    %p45 = scmp.eq.s32.totalorder %s17, 1
    %p46 = por %p44, %p45
    %p47 = scmp.ne.s32.totalorder %s39, %s42
    %p48 = scmp.eq.s32.totalorder %s17, 0
    %p49 = por %p47, %p48
    %p50 = scmp.ne.s32.totalorder %s39, %s42
    %p51 = scmp.eq.s32.totalorder %s22, 1
    %p52 = por %p50, %p51
    %p53 = scmp.ne.s32.totalorder %s42, %s43
    %p54 = scmp.eq.s32.totalorder %s22, 0
    %p55 = por %p53, %p54
    %p56 = scmp.ne.s32.totalorder %s42, %s43
    %p57 = scmp.eq.s32.totalorder %s23, 1
    %p58 = por %p56, %p57
    %p60 = scmp.ne.s32.totalorder %s43, %s59
    %p61 = scmp.eq.s32.totalorder %s23, 0
    %p62 = por %p60, %p61
    %s63 = ssub.s32 %s24, %s36
    %s64 = ssub.s32 %s25, %s32
    %s65 = sor.u32 %s63, %s64
    %p66 = scmp.eq.s32.totalorder %s65, 0
    %s68 = sadd.s32 %s67, 1
    %s69 = scalar_select %p66, %s67, %s68
    %p72 = pneg %p66
    %p73 = scmp.eq.s32.totalorder %s17, 1
    %p74 = por %p72, %p73
    %p75 = scmp.ne.s32.totalorder %s67, %s70
    %p76 = scmp.eq.s32.totalorder %s17, 0
    %p77 = por %p75, %p76
    %p78 = scmp.ne.s32.totalorder %s67, %s70
    %p79 = scmp.eq.s32.totalorder %s22, 1
    %p80 = por %p78, %p79
    %p81 = scmp.ne.s32.totalorder %s70, %s71
    %p82 = scmp.eq.s32.totalorder %s22, 0
    %p83 = por %p81, %p82
    %p84 = scmp.ne.s32.totalorder %s70, %s71
    %p85 = scmp.eq.s32.totalorder %s23, 1
    %p86 = por %p84, %p85
    %p88 = scmp.ne.s32.totalorder %s71, %s87
    %p89 = scmp.eq.s32.totalorder %s23, 0
    %p90 = por %p88, %p89
    %s92 = sadd.s32 %s91, 1
    %p95 = scmp.eq.s32.totalorder %s17, 1
    %p96 = scmp.ne.s32.totalorder %s91, %s93
    %p97 = scmp.eq.s32.totalorder %s17, 0
    %p98 = por %p96, %p97
    %p99 = scmp.ne.s32.totalorder %s91, %s93
    %p100 = scmp.eq.s32.totalorder %s22, 1
    %p101 = por %p99, %p100
    %p102 = scmp.ne.s32.totalorder %s93, %s94
    %p103 = scmp.eq.s32.totalorder %s22, 0
    %p104 = por %p102, %p103
    %p105 = scmp.ne.s32.totalorder %s93, %s94
    %p106 = scmp.eq.s32.totalorder %s23, 1
    %p107 = por %p105, %p106
    %p109 = scmp.ne.s32.totalorder %s94, %s108
    %p110 = scmp.eq.s32.totalorder %s23, 0
    %p111 = por %p109, %p110
    %s113 = sadd.s32 %s112, 1
    %p116 = scmp.eq.s32.totalorder %s17, 1
    %p117 = scmp.ne.s32.totalorder %s112, %s114
    %p118 = scmp.eq.s32.totalorder %s17, 0
    %p119 = por %p117, %p118
    %p120 = scmp.ne.s32.totalorder %s112, %s114
    %p121 = scmp.eq.s32.totalorder %s22, 1
    %p122 = por %p120, %p121
    %p123 = scmp.ne.s32.totalorder %s114, %s115
    %p124 = scmp.eq.s32.totalorder %s22, 0
    %p125 = por %p123, %p124
    %p126 = scmp.ne.s32.totalorder %s114, %s115
    %p127 = scmp.eq.s32.totalorder %s23, 1
    %p128 = por %p126, %p127
    %p130 = scmp.ne.s32.totalorder %s115, %s129
    %p131 = scmp.eq.s32.totalorder %s23, 0
    %p132 = por %p130, %p131
    %s134 = sadd.s32 %s133, 1
    %p137 = scmp.eq.s32.totalorder %s17, 1
    %p138 = scmp.ne.s32.totalorder %s133, %s135
    %p139 = scmp.eq.s32.totalorder %s17, 0
    %p140 = por %p138, %p139
    %p141 = scmp.ne.s32.totalorder %s133, %s135
    %p142 = scmp.eq.s32.totalorder %s22, 1
    %p143 = por %p141, %p142
    %p144 = scmp.ne.s32.totalorder %s135, %s136
    %p145 = scmp.eq.s32.totalorder %s22, 0
    %p146 = por %p144, %p145
    %p147 = scmp.ne.s32.totalorder %s135, %s136
    %p148 = scmp.eq.s32.totalorder %s23, 1
    %p149 = por %p147, %p148
    %p151 = scmp.ne.s32.totalorder %s136, %s150
    %p152 = scmp.eq.s32.totalorder %s23, 0
    %p153 = por %p151, %p152
    %s155 = sadd.s32 %s154, 1
    %p158 = scmp.eq.s32.totalorder %s17, 1
    %p159 = scmp.ne.s32.totalorder %s154, %s156
    %p160 = scmp.eq.s32.totalorder %s17, 0
    %p161 = por %p159, %p160
    %p162 = scmp.ne.s32.totalorder %s154, %s156
    %p163 = scmp.eq.s32.totalorder %s22, 1
    %p164 = por %p162, %p163
    %p165 = scmp.ne.s32.totalorder %s156, %s157
    %p166 = scmp.eq.s32.totalorder %s22, 0
    %p167 = por %p165, %p166
    %p168 = scmp.ne.s32.totalorder %s156, %s157
    %p169 = scmp.eq.s32.totalorder %s23, 1
    %p170 = por %p168, %p169
    %p172 = scmp.ne.s32.totalorder %s157, %s171
    %p173 = scmp.eq.s32.totalorder %s23, 0
    %p174 = por %p172, %p173
    %s176 = sadd.s32 %s175, 1
    %p179 = scmp.eq.s32.totalorder %s17, 1
    %p180 = scmp.ne.s32.totalorder %s175, %s177
    %p181 = scmp.eq.s32.totalorder %s17, 0
    %p182 = por %p180, %p181
    %p183 = scmp.ne.s32.totalorder %s175, %s177
    %p184 = scmp.eq.s32.totalorder %s22, 1
    %p185 = por %p183, %p184
    %p186 = scmp.ne.s32.totalorder %s177, %s178
    %p187 = scmp.eq.s32.totalorder %s22, 0
    %p188 = por %p186, %p187
    %p189 = scmp.ne.s32.totalorder %s177, %s178
    %p190 = scmp.eq.s32.totalorder %s23, 1
    %p191 = por %p189, %p190
    %p193 = scmp.ne.s32.totalorder %s178, %s192
    %p194 = scmp.eq.s32.totalorder %s23, 0
    %p195 = por %p193, %p194
    %s197 = sadd.s32 %s196, 1
    %p200 = scmp.eq.s32.totalorder %s17, 1
    %p201 = scmp.ne.s32.totalorder %s196, %s198
    %p202 = scmp.eq.s32.totalorder %s17, 0
    %p203 = por %p201, %p202
    %p204 = scmp.ne.s32.totalorder %s196, %s198
    %p205 = scmp.eq.s32.totalorder %s22, 1
    %p206 = por %p204, %p205
    %p207 = scmp.ne.s32.totalorder %s198, %s199
    %p208 = scmp.eq.s32.totalorder %s22, 0
    %p209 = por %p207, %p208
    %p210 = scmp.ne.s32.totalorder %s198, %s199
    %p211 = scmp.eq.s32.totalorder %s23, 1
    %p212 = por %p210, %p211
    %p214 = scmp.ne.s32.totalorder %s199, %s213
    %p215 = scmp.eq.s32.totalorder %s23, 0
    %p216 = por %p214, %p215
    %s218 = sadd.s32 %s217, 1
    %p221 = scmp.eq.s32.totalorder %s17, 1
    %p222 = scmp.ne.s32.totalorder %s217, %s219
    %p223 = scmp.eq.s32.totalorder %s17, 0
    %p224 = por %p222, %p223
    %p225 = scmp.ne.s32.totalorder %s217, %s219
    %p226 = scmp.eq.s32.totalorder %s22, 1
    %p227 = por %p225, %p226
    %p228 = scmp.ne.s32.totalorder %s219, %s220
    %p229 = scmp.eq.s32.totalorder %s22, 0
    %p230 = por %p228, %p229
    %p231 = scmp.ne.s32.totalorder %s219, %s220
    %p232 = scmp.eq.s32.totalorder %s23, 1
    %p233 = por %p231, %p232
    %p235 = scmp.ne.s32.totalorder %s220, %s234
    %p236 = scmp.eq.s32.totalorder %s23, 0
    %p237 = por %p235, %p236
    %s239 = sadd.s32 %s238, 1
    %p242 = scmp.eq.s32.totalorder %s17, 1
    %p243 = scmp.ne.s32.totalorder %s238, %s240
    %p244 = scmp.eq.s32.totalorder %s17, 0
    %p245 = por %p243, %p244
    %p246 = scmp.ne.s32.totalorder %s238, %s240
    %p247 = scmp.eq.s32.totalorder %s22, 1
    %p248 = por %p246, %p247
    %p249 = scmp.ne.s32.totalorder %s240, %s241
    %p250 = scmp.eq.s32.totalorder %s22, 0
    %p251 = por %p249, %p250
    %p252 = scmp.ne.s32.totalorder %s240, %s241
    %p253 = scmp.eq.s32.totalorder %s23, 1
    %p254 = por %p252, %p253
    %p256 = scmp.ne.s32.totalorder %s241, %s255
    %p257 = scmp.eq.s32.totalorder %s23, 0
    %p258 = por %p256, %p257
    %s260 = sadd.s32 %s259, 1
    %p263 = scmp.eq.s32.totalorder %s17, 1
    %p264 = scmp.ne.s32.totalorder %s259, %s261
    %p265 = scmp.eq.s32.totalorder %s17, 0
    %p266 = por %p264, %p265
    %p267 = scmp.ne.s32.totalorder %s259, %s261
    %p268 = scmp.eq.s32.totalorder %s22, 1
    %p269 = por %p267, %p268
    %p270 = scmp.ne.s32.totalorder %s261, %s262
    %p271 = scmp.eq.s32.totalorder %s22, 0
    %p272 = por %p270, %p271
    %p273 = scmp.ne.s32.totalorder %s261, %s262
    %p274 = scmp.eq.s32.totalorder %s23, 1
    %p275 = por %p273, %p274
    %p277 = scmp.ne.s32.totalorder %s262, %s276
    %p278 = scmp.eq.s32.totalorder %s23, 0
    %p279 = por %p277, %p278
    %s280 = ssub.s32 %s24, %s36
    %s281 = ssub.s32 %s25, %s32
    %s282 = sor.u32 %s280, %s281
    %p283 = scmp.eq.s32.totalorder %s282, 0
    %s285 = sadd.s32 %s284, 1
    %s286 = scalar_select %p283, %s284, %s285
    %p289 = pneg %p283
    %p290 = scmp.eq.s32.totalorder %s17, 1
    %p291 = por %p289, %p290
    %p292 = scmp.ne.s32.totalorder %s284, %s287
    %p293 = scmp.eq.s32.totalorder %s17, 0
    %p294 = por %p292, %p293
    %p295 = scmp.ne.s32.totalorder %s284, %s287
    %p296 = scmp.eq.s32.totalorder %s22, 1
    %p297 = por %p295, %p296
    %p298 = scmp.ne.s32.totalorder %s287, %s288
    %p299 = scmp.eq.s32.totalorder %s22, 0
    %p300 = por %p298, %p299
    %p301 = scmp.ne.s32.totalorder %s287, %s288
    %p302 = scmp.eq.s32.totalorder %s23, 1
    %p303 = por %p301, %p302
    %p305 = scmp.ne.s32.totalorder %s288, %s304
    %p306 = scmp.eq.s32.totalorder %s23, 0
    %p307 = por %p305, %p306
    %p308 = scmp.le.s32.totalorder 1, %s17
    %p309 = scmp.lt.s32.totalorder %s17, 3
    %p310 = pnand %p308, %p309
    %p311 = pneg %p310
    // Predicated region
    $region9: #{double_conv_pallas.1} parent=5 // pred_check
      _
    $region10: #{double_conv_pallas.1} parent=5 // pred_check_branch
      %313 = sbr.rel (%p310) target = $region12
    $region11: #{double_conv_pallas.1} parent=5 // pred_region
      %s314 = ssub.s32 %s17, 1
      // Predicated region
      $region13: #{double_conv_pallas.1} parent=11 // pred_check
        %p315 = pneg %p55
      $region14: #{double_conv_pallas.1} parent=11 // pred_check_branch
        %317 = sbr.rel (%p315) target = $region16
      $region15: #{double_conv_pallas.1} parent=11 // pred_region
        %p318 = scmp.lt.s32.totalorder %s27, 0
        %s319 = scalar_select %p318, %s27, 0
        %s320 = smul.addr %s319, 3
        %s321 = scalar_lea.vmem %s0, %s320
      $region16: #{double_conv_pallas.1} parent=11 // pred_fallthru
        _
      // Predicated region
      $region17: #{double_conv_pallas.1} parent=11 // pred_check
        %p322 = pneg %p104
      $region18: #{double_conv_pallas.1} parent=11 // pred_check_branch
        %324 = sbr.rel (%p322) target = $region20
      $region19: #{double_conv_pallas.1} parent=11 // pred_region
        _
      $region20: #{double_conv_pallas.1} parent=11 // pred_fallthru
        _
      // Predicated region
      $region21: #{double_conv_pallas.1} parent=11 // pred_check
        %p325 = pneg %p125
      $region22: #{double_conv_pallas.1} parent=11 // pred_check_branch
        %327 = sbr.rel (%p325) target = $region24
      $region23: #{double_conv_pallas.1} parent=11 // pred_region
        _
      $region24: #{double_conv_pallas.1} parent=11 // pred_fallthru
        _
      // Predicated region
      $region25: #{double_conv_pallas.1} parent=11 // pred_check
        %p328 = pneg %p146
      $region26: #{double_conv_pallas.1} parent=11 // pred_check_branch
        %330 = sbr.rel (%p328) target = $region28
      $region27: #{double_conv_pallas.1} parent=11 // pred_region
        _
      $region28: #{double_conv_pallas.1} parent=11 // pred_fallthru
        _
      // Predicated region
      $region29: #{double_conv_pallas.1} parent=11 // pred_check
        %p331 = pneg %p167
      $region30: #{double_conv_pallas.1} parent=11 // pred_check_branch
        %333 = sbr.rel (%p331) target = $region32
      $region31: #{double_conv_pallas.1} parent=11 // pred_region
        _
      $region32: #{double_conv_pallas.1} parent=11 // pred_fallthru
        _
      // Predicated region
      $region33: #{double_conv_pallas.1} parent=11 // pred_check
        %p334 = pneg %p188
      $region34: #{double_conv_pallas.1} parent=11 // pred_check_branch
        %336 = sbr.rel (%p334) target = $region36
      $region35: #{double_conv_pallas.1} parent=11 // pred_region
        _
      $region36: #{double_conv_pallas.1} parent=11 // pred_fallthru
        _
      // Predicated region
      $region37: #{double_conv_pallas.1} parent=11 // pred_check
        %p337 = pneg %p209
      $region38: #{double_conv_pallas.1} parent=11 // pred_check_branch
        %339 = sbr.rel (%p337) target = $region40
      $region39: #{double_conv_pallas.1} parent=11 // pred_region
        _
      $region40: #{double_conv_pallas.1} parent=11 // pred_fallthru
        _
      // Predicated region
      $region41: #{double_conv_pallas.1} parent=11 // pred_check
        %p340 = pneg %p230
      $region42: #{double_conv_pallas.1} parent=11 // pred_check_branch
        %342 = sbr.rel (%p340) target = $region44
      $region43: #{double_conv_pallas.1} parent=11 // pred_region
        _
      $region44: #{double_conv_pallas.1} parent=11 // pred_fallthru
        _
      // Predicated region
      $region45: #{double_conv_pallas.1} parent=11 // pred_check
        %p343 = pneg %p251
      $region46: #{double_conv_pallas.1} parent=11 // pred_check_branch
        %345 = sbr.rel (%p343) target = $region48
      $region47: #{double_conv_pallas.1} parent=11 // pred_region
        _
      $region48: #{double_conv_pallas.1} parent=11 // pred_fallthru
        _
      // Predicated region
      $region49: #{double_conv_pallas.1} parent=11 // pred_check
        %p346 = pneg %p272
      $region50: #{double_conv_pallas.1} parent=11 // pred_check_branch
        %348 = sbr.rel (%p346) target = $region52
      $region51: #{double_conv_pallas.1} parent=11 // pred_region
        _
      $region52: #{double_conv_pallas.1} parent=11 // pred_fallthru
        _
    $region12: #{double_conv_pallas.1} parent=5 // pred_fallthru
      _
    %p349 = scmp.lt.s32.totalorder %s17, 2
    // Predicated region
    $region53: #{double_conv_pallas.1} parent=5 // pred_check
      %p350 = pneg %p349
    $region54: #{double_conv_pallas.1} parent=5 // pred_check_branch
      %352 = sbr.rel (%p350) target = $region56
    $region55: #{double_conv_pallas.1} parent=5 // pred_region
      // Predicated region
      $region57: #{double_conv_pallas.1} parent=55 // pred_check
        %p353 = pneg %p77
      $region58: #{double_conv_pallas.1} parent=55 // pred_check_branch
        %355 = sbr.rel (%p353) target = $region60
      $region59: #{double_conv_pallas.1} parent=55 // pred_region
        %p356 = scmp.lt.s32.totalorder %s24, 1
        %s357 = scalar_select %p356, %s24, 1
        %p358 = scmp.lt.s32.totalorder %s25, 0
        %s359 = scalar_select %p358, %s25, 0
        %s360 = smul.addr %s359, 8
        %s361 = smul.addr %s357, 8
        %s362 = sadd.s32 %s360, %s361
        %s363 = smul.addr %s362, 4
        %s364 = scalar_lea.vmem %s1, %s363
      $region60: #{double_conv_pallas.1} parent=55 // pred_fallthru
        _
    $region56: #{double_conv_pallas.1} parent=5 // pred_fallthru
      _
    %p365 = scmp.le.s32.totalorder 1, %s17
    %p366 = scmp.lt.s32.totalorder %s17, 3
    %p367 = pnand %p365, %p366
    %p368 = pneg %p367
    // Predicated region
    $region61: #{double_conv_pallas.1} parent=5 // pred_check
      _
    $region62: #{double_conv_pallas.1} parent=5 // pred_check_branch
      %370 = sbr.rel (%p367) target = $region64
    $region63: #{double_conv_pallas.1} parent=5 // pred_region
      %s371 = ssub.s32 %s17, 1
      %p372 = scmp.lt.s32.totalorder %s27, 0
      %s373 = scalar_select %p372, %s27, 0
      %s374 = smul.addr %s373, 3
      %s375 = scalar_lea.vmem %s0, %s374
      %p376 = pneg %p55
      %p377 = pneg %p52
      %p378 = scmp.lt.s32.totalorder %s26, 1
      %s379 = scalar_select %p378, %s26, 1
      %p380 = scmp.lt.s32.totalorder %s27, 0
      %s381 = scalar_select %p380, %s27, 0
      %s382 = smul.addr %s381, 8
      %s383 = smul.addr %s379, 8
      %s384 = sadd.s32 %s382, %s383
      %s385 = smul.addr %s384, 4
      %s386 = scalar_lea.vmem %s1, %s385
      %p387 = pneg %p83
      %p388 = pneg %p80
      %p389 = pneg %p104
      %p390 = pneg %p101
      %p391 = pneg %p125
      %p392 = pneg %p122
      %p393 = pneg %p146
      %p394 = pneg %p143
      %p395 = pneg %p167
      %p396 = pneg %p164
      %p397 = pneg %p188
      %p398 = pneg %p185
      %p399 = pneg %p209
      %p400 = pneg %p206
      %p401 = pneg %p230
      %p402 = pneg %p227
      %p403 = pneg %p251
      %p404 = pneg %p248
      %p405 = pneg %p272
      %p406 = pneg %p269
      %p407 = pneg %p300
      %p408 = pneg %p297
      %p409 = scmp.lt.s32.totalorder %s26, 1
      %s410 = scalar_select %p409, %s26, 1
      %p411 = scmp.lt.s32.totalorder %s27, 0
      %s412 = scalar_select %p411, %s27, 0
      %s413 = smul.addr %s412, 3
      %s414 = smul.addr %s410, 3
      %s415 = sadd.s32 %s413, %s414
      %s416 = smul.addr %s415, 8
      %s417 = scalar_lea.vmem %s11, %s416
      %p418 = scmp.lt.s32.totalorder %s27, 0
      %s419 = scalar_select %p418, %s27, 0
      %s420 = smul.addr %s419, 3
      %s421 = scalar_lea.vmem %s0, %s420
      %p422 = scmp.lt.s32.totalorder %s26, 1
      %s423 = scalar_select %p422, %s26, 1
      %p424 = scmp.lt.s32.totalorder %s27, 0
      %s425 = scalar_select %p424, %s27, 0
      %s426 = smul.addr %s425, 8
      %s427 = smul.addr %s423, 8
      %s428 = sadd.s32 %s426, %s427
      %s429 = smul.addr %s428, 4
      %s430 = scalar_lea.vmem %s1, %s429
      %p431 = scmp.lt.s32.totalorder %s26, 1
      %s432 = scalar_select %p431, %s26, 1
      %p433 = scmp.lt.s32.totalorder %s27, 0
      %s434 = scalar_select %p433, %s27, 0
      %s435 = smul.addr %s434, 3
      %s436 = smul.addr %s432, 3
      %s437 = sadd.s32 %s435, %s436
      %s438 = smul.addr %s437, 8
      %s439 = scalar_lea.vmem %s11, %s438
      %v441 = vld [vmem:[%s430] sm:$0xff]
      %v442 = vld [vmem:[%s430 + $0x8] sm:$0xf]
      %v443 = vld [vmem:[%s430 + $0x10] sm:$0xff]
      %v444 = vld [vmem:[%s430 + $0x18] sm:$0xf]
      %v445 = vld [vmem:[%s2] sm:$0xf]
      %v446 = vld [vmem:[%s2 + $0x4] sm:$0xf]
      %v447 = vld [vmem:[%s430] sm:$0xff]
      %v448 = vld [vmem:[%s430 + $0x8] sm:$0xff]
      %v449 = vld [vmem:[%s430 + $0x10] sm:$0xff]
      %v450 = vld [vmem:[%s430 + $0x18] sm:$0xff]
      %s451 = scalar_lea.vmem %s2, 8
      %v452 = vld [vmem:[%s451] sm:$0xf]
      %v453 = vld [vmem:[%s451 + $0x4] sm:$0xf]
      %v456 = vunpack.c.l.b16 %v452
      %v457 = vunpack.c.l.b16 %v453
      %v458 = vpack.c.b16 %v457, %v456
      %v463 = vunpack.c.l.b16 %v447
      %v464 = vunpack.c.h.b16 %v447
      %v465 = vunpack.c.l.b16 %v448
      %v466 = vunpack.c.h.b16 %v448
      %v467 = vunpack.c.l.b16 %v449
      %v468 = vunpack.c.h.b16 %v449
      %v469 = vunpack.c.l.b16 %v450
      %v470 = vunpack.c.h.b16 %v450
      %v471 = vpack.c.b16 %v467, %v463
      %v472 = vpack.c.b16 %v468, %v464
      %v473 = vpack.c.b16 %v469, %v465
      %v474 = vpack.c.b16 %v470, %v466
      %475 = vrot.lane.b32.xlu0 %v471, 127
      %v476 = vpop.permute.xlu0 %475
      %477 = vrot.lane.b32.xlu0 %v472, 127
      %v478 = vpop.permute.xlu0 %477
      %479 = vrot.lane.b32.xlu0 %v473, 127
      %v480 = vpop.permute.xlu0 %479
      %481 = vrot.lane.b32.xlu0 %v474, 127
      %v482 = vpop.permute.xlu0 %481
      %vm483 = vcmask 1039360
      %v484 = vsel %vm483, %v476, %v478
      %v485 = vsel %vm483, %v478, %v480
      %v486 = vsel %vm483, %v480, %v482
      %vm490 = vcmask 130048
      %v492 = vsel %vm490, %v458, 0
      %494 = vmatpush.bf16.msra.mxu0 0
      %495 = vmatpush.bf16.msra.mxu0 0
      %496 = vmatpush.bf16.msra.mxu0 0
      %497 = vmatpush.bf16.msra.mxu0 0
      %498 = vmatpush.bf16.msra.mxu0 0
      %499 = vmatpush.bf16.msra.mxu0 0
      %500 = vmatpush.bf16.msra.mxu0 0
      %501 = vmatpush.bf16.msra.mxu0 %v484
      %502 = vmatmul.bf16.gmra.mxu0 %v492
      %v503 = vpop.f32.mrf.mxu0
      %v504 = vadd.f32 0.0, %v503
      %v505 = vpop.f32.mrf.mxu0
      %v506 = vadd.f32 0.0, %v505
      %507 = vdwg.mxu0
      %508 = vmatpush.bf16.msra.mxu0 0
      %509 = vmatpush.bf16.msra.mxu0 0
      %510 = vmatpush.bf16.msra.mxu0 0
      %511 = vmatpush.bf16.msra.mxu0 0
      %512 = vmatpush.bf16.msra.mxu0 0
      %513 = vmatpush.bf16.msra.mxu0 0
      %514 = vmatpush.bf16.msra.mxu0 0
      %515 = vmatpush.bf16.msra.mxu0 %v485
      %516 = vmatmul.bf16.gmra.mxu0 %v492
      %v517 = vpop.f32.mrf.mxu0
      %v518 = vadd.f32 0.0, %v517
      %v519 = vpop.f32.mrf.mxu0
      %v520 = vadd.f32 0.0, %v519
      %521 = vdwg.mxu0
      %522 = vmatpush.bf16.msra.mxu0 0
      %523 = vmatpush.bf16.msra.mxu0 0
      %524 = vmatpush.bf16.msra.mxu0 0
      %525 = vmatpush.bf16.msra.mxu0 0
      %526 = vmatpush.bf16.msra.mxu0 0
      %527 = vmatpush.bf16.msra.mxu0 0
      %528 = vmatpush.bf16.msra.mxu0 0
      %529 = vmatpush.bf16.msra.mxu0 %v486
      %530 = vmatmul.bf16.gmra.mxu0 %v492
      %v531 = vpop.f32.mrf.mxu0
      %v532 = vadd.f32 0.0, %v531
      %v533 = vpop.f32.mrf.mxu0
      %v534 = vadd.f32 0.0, %v533
      %535 = vdwg.mxu0
      %v538 = vunpack.c.l.b16 %v445
      %v539 = vunpack.c.l.b16 %v446
      %v540 = vpack.c.b16 %v539, %v538
      %v545 = vunpack.c.l.b16 %v441
      %v546 = vunpack.c.h.b16 %v441
      %v547 = vunpack.c.l.b16 %v442
      %v548 = vunpack.c.l.b16 %v443
      %v549 = vunpack.c.h.b16 %v443
      %v550 = vunpack.c.l.b16 %v444
      %v551 = vpack.c.b16 %v548, %v545
      %v552 = vpack.c.b16 %v549, %v546
      %v553 = vpack.c.b16 %v550, %v547
      %v558 = vsel %vm490, %v540, 0
      %560 = vmatpush.bf16.msra.mxu0 0
      %561 = vmatpush.bf16.msra.mxu0 0
      %562 = vmatpush.bf16.msra.mxu0 0
      %563 = vmatpush.bf16.msra.mxu0 0
      %564 = vmatpush.bf16.msra.mxu0 0
      %565 = vmatpush.bf16.msra.mxu0 0
      %566 = vmatpush.bf16.msra.mxu0 0
      %567 = vmatpush.bf16.msra.mxu0 %v551
      %568 = vmatmul.bf16.gmra.mxu0 %v558
      %v569 = vpop.f32.mrf.mxu0
      %v570 = vadd.f32 %v504, %v569
      %v571 = vpop.f32.mrf.mxu0
      %v572 = vadd.f32 %v506, %v571
      %573 = vdwg.mxu0
      %574 = vmatpush.bf16.msra.mxu0 0
      %575 = vmatpush.bf16.msra.mxu0 0
      %576 = vmatpush.bf16.msra.mxu0 0
      %577 = vmatpush.bf16.msra.mxu0 0
      %578 = vmatpush.bf16.msra.mxu0 0
      %579 = vmatpush.bf16.msra.mxu0 0
      %580 = vmatpush.bf16.msra.mxu0 0
      %581 = vmatpush.bf16.msra.mxu0 %v552
      %582 = vmatmul.bf16.gmra.mxu0 %v558
      %v583 = vpop.f32.mrf.mxu0
      %v584 = vadd.f32 %v518, %v583
      %v585 = vpop.f32.mrf.mxu0
      %v586 = vadd.f32 %v520, %v585
      %587 = vdwg.mxu0
      %588 = vmatpush.bf16.msra.mxu0 0
      %589 = vmatpush.bf16.msra.mxu0 0
      %590 = vmatpush.bf16.msra.mxu0 0
      %591 = vmatpush.bf16.msra.mxu0 0
      %592 = vmatpush.bf16.msra.mxu0 0
      %593 = vmatpush.bf16.msra.mxu0 0
      %594 = vmatpush.bf16.msra.mxu0 0
      %595 = vmatpush.bf16.msra.mxu0 %v553
      %596 = vmatmul.bf16.gmra.mxu0 %v558
      %v597 = vpop.f32.mrf.mxu0
      %v598 = vadd.f32 %v532, %v597
      %v599 = vpop.f32.mrf.mxu0
      %v600 = vadd.f32 %v534, %v599
      %601 = vdwg.mxu0
      %s602 = scalar_lea.vmem %s2, 16
      %v603 = vld [vmem:[%s602] sm:$0xf]
      %v604 = vld [vmem:[%s602 + $0x4] sm:$0xf]
      %v607 = vunpack.c.l.b16 %v603
      %v608 = vunpack.c.l.b16 %v604
      %v609 = vpack.c.b16 %v608, %v607
      %610 = vrot.lane.b32.xlu0 %v471, 126
      %v611 = vpop.permute.xlu0 %610
      %612 = vrot.lane.b32.xlu0 %v472, 126
      %v613 = vpop.permute.xlu0 %612
      %614 = vrot.lane.b32.xlu0 %v473, 126
      %v615 = vpop.permute.xlu0 %614
      %616 = vrot.lane.b32.xlu0 %v474, 126
      %v617 = vpop.permute.xlu0 %616
      %vm618 = vcmask 1031168
      %v619 = vsel %vm618, %v611, %v613
      %v620 = vsel %vm618, %v613, %v615
      %v621 = vsel %vm618, %v615, %v617
      %v626 = vsel %vm490, %v609, 0
      %628 = vmatpush.bf16.msra.mxu0 0
      %629 = vmatpush.bf16.msra.mxu0 0
      %630 = vmatpush.bf16.msra.mxu0 0
      %631 = vmatpush.bf16.msra.mxu0 0
      %632 = vmatpush.bf16.msra.mxu0 0
      %633 = vmatpush.bf16.msra.mxu0 0
      %634 = vmatpush.bf16.msra.mxu0 0
      %635 = vmatpush.bf16.msra.mxu0 %v619
      %636 = vmatmul.bf16.gmra.mxu0 %v626
      %v637 = vpop.f32.mrf.mxu0
      %v638 = vadd.f32 0.0, %v637
      %v639 = vpop.f32.mrf.mxu0
      %v640 = vadd.f32 0.0, %v639
      %641 = vdwg.mxu0
      %642 = vmatpush.bf16.msra.mxu0 0
      %643 = vmatpush.bf16.msra.mxu0 0
      %644 = vmatpush.bf16.msra.mxu0 0
      %645 = vmatpush.bf16.msra.mxu0 0
      %646 = vmatpush.bf16.msra.mxu0 0
      %647 = vmatpush.bf16.msra.mxu0 0
      %648 = vmatpush.bf16.msra.mxu0 0
      %649 = vmatpush.bf16.msra.mxu0 %v620
      %650 = vmatmul.bf16.gmra.mxu0 %v626
      %v651 = vpop.f32.mrf.mxu0
      %v652 = vadd.f32 0.0, %v651
      %v653 = vpop.f32.mrf.mxu0
      %v654 = vadd.f32 0.0, %v653
      %655 = vdwg.mxu0
      %656 = vmatpush.bf16.msra.mxu0 0
      %657 = vmatpush.bf16.msra.mxu0 0
      %658 = vmatpush.bf16.msra.mxu0 0
      %659 = vmatpush.bf16.msra.mxu0 0
      %660 = vmatpush.bf16.msra.mxu0 0
      %661 = vmatpush.bf16.msra.mxu0 0
      %662 = vmatpush.bf16.msra.mxu0 0
      %663 = vmatpush.bf16.msra.mxu0 %v621
      %664 = vmatmul.bf16.gmra.mxu0 %v626
      %v665 = vpop.f32.mrf.mxu0
      %v666 = vadd.f32 0.0, %v665
      %v667 = vpop.f32.mrf.mxu0
      %v668 = vadd.f32 0.0, %v667
      %669 = vdwg.mxu0
      %v670 = vadd.f32 %v570, %v638
      %v671 = vadd.f32 %v584, %v652
      %v672 = vadd.f32 %v598, %v666
      %v673 = vadd.f32 %v572, %v640
      %v674 = vadd.f32 %v586, %v654
      %v675 = vadd.f32 %v600, %v668
      %s676 = scalar_lea.vmem %s2, 24
      %v677 = vld [vmem:[%s676] sm:$0xf]
      %v678 = vld [vmem:[%s676 + $0x4] sm:$0xf]
      %v681 = vunpack.c.l.b16 %v677
      %v682 = vunpack.c.l.b16 %v678
      %v683 = vpack.c.b16 %v682, %v681
      %684 = vrot.lane.b32.xlu0 %v471, 110
      %v685 = vpop.permute.xlu0 %684
      %686 = vrot.lane.b32.xlu0 %v472, 110
      %v687 = vpop.permute.xlu0 %686
      %688 = vrot.lane.b32.xlu0 %v473, 110
      %v689 = vpop.permute.xlu0 %688
      %690 = vrot.lane.b32.xlu0 %v474, 110
      %v691 = vpop.permute.xlu0 %690
      %vm692 = vcmask 900096
      %v693 = vsel %vm692, %v685, %v687
      %v694 = vsel %vm692, %v687, %v689
      %v695 = vsel %vm692, %v689, %v691
      %v700 = vsel %vm490, %v683, 0
      %702 = vmatpush.bf16.msra.mxu0 0
      %703 = vmatpush.bf16.msra.mxu0 0
      %704 = vmatpush.bf16.msra.mxu0 0
      %705 = vmatpush.bf16.msra.mxu0 0
      %706 = vmatpush.bf16.msra.mxu0 0
      %707 = vmatpush.bf16.msra.mxu0 0
      %708 = vmatpush.bf16.msra.mxu0 0
      %709 = vmatpush.bf16.msra.mxu0 %v693
      %710 = vmatmul.bf16.gmra.mxu0 %v700
      %v711 = vpop.f32.mrf.mxu0
      %v712 = vadd.f32 0.0, %v711
      %v713 = vpop.f32.mrf.mxu0
      %v714 = vadd.f32 0.0, %v713
      %715 = vdwg.mxu0
      %716 = vmatpush.bf16.msra.mxu0 0
      %717 = vmatpush.bf16.msra.mxu0 0
      %718 = vmatpush.bf16.msra.mxu0 0
      %719 = vmatpush.bf16.msra.mxu0 0
      %720 = vmatpush.bf16.msra.mxu0 0
      %721 = vmatpush.bf16.msra.mxu0 0
      %722 = vmatpush.bf16.msra.mxu0 0
      %723 = vmatpush.bf16.msra.mxu0 %v694
      %724 = vmatmul.bf16.gmra.mxu0 %v700
      %v725 = vpop.f32.mrf.mxu0
      %v726 = vadd.f32 0.0, %v725
      %v727 = vpop.f32.mrf.mxu0
      %v728 = vadd.f32 0.0, %v727
      %729 = vdwg.mxu0
      %730 = vmatpush.bf16.msra.mxu0 0
      %731 = vmatpush.bf16.msra.mxu0 0
      %732 = vmatpush.bf16.msra.mxu0 0
      %733 = vmatpush.bf16.msra.mxu0 0
      %734 = vmatpush.bf16.msra.mxu0 0
      %735 = vmatpush.bf16.msra.mxu0 0
      %736 = vmatpush.bf16.msra.mxu0 0
      %737 = vmatpush.bf16.msra.mxu0 %v695
      %738 = vmatmul.bf16.gmra.mxu0 %v700
      %v739 = vpop.f32.mrf.mxu0
      %v740 = vadd.f32 0.0, %v739
      %v741 = vpop.f32.mrf.mxu0
      %v742 = vadd.f32 0.0, %v741
      %743 = vdwg.mxu0
      %v744 = vadd.f32 %v670, %v712
      %v745 = vadd.f32 %v671, %v726
      %v746 = vadd.f32 %v672, %v740
      %v747 = vadd.f32 %v673, %v714
      %v748 = vadd.f32 %v674, %v728
      %v749 = vadd.f32 %v675, %v742
      %s750 = scalar_lea.vmem %s2, 32
      %v751 = vld [vmem:[%s750] sm:$0xf]
      %v752 = vld [vmem:[%s750 + $0x4] sm:$0xf]
      %v755 = vunpack.c.l.b16 %v751
      %v756 = vunpack.c.l.b16 %v752
      %v757 = vpack.c.b16 %v756, %v755
      %758 = vrot.lane.b32.xlu0 %v471, 109
      %v759 = vpop.permute.xlu0 %758
      %760 = vrot.lane.b32.xlu0 %v472, 109
      %v761 = vpop.permute.xlu0 %760
      %762 = vrot.lane.b32.xlu0 %v473, 109
      %v763 = vpop.permute.xlu0 %762
      %764 = vrot.lane.b32.xlu0 %v474, 109
      %v765 = vpop.permute.xlu0 %764
      %vm766 = vcmask 891904
      %v767 = vsel %vm766, %v759, %v761
      %v768 = vsel %vm766, %v761, %v763
      %v769 = vsel %vm766, %v763, %v765
      %v774 = vsel %vm490, %v757, 0
      %776 = vmatpush.bf16.msra.mxu0 0
      %777 = vmatpush.bf16.msra.mxu0 0
      %778 = vmatpush.bf16.msra.mxu0 0
      %779 = vmatpush.bf16.msra.mxu0 0
      %780 = vmatpush.bf16.msra.mxu0 0
      %781 = vmatpush.bf16.msra.mxu0 0
      %782 = vmatpush.bf16.msra.mxu0 0
      %783 = vmatpush.bf16.msra.mxu0 %v767
      %784 = vmatmul.bf16.gmra.mxu0 %v774
      %v785 = vpop.f32.mrf.mxu0
      %v786 = vadd.f32 0.0, %v785
      %v787 = vpop.f32.mrf.mxu0
      %v788 = vadd.f32 0.0, %v787
      %789 = vdwg.mxu0
      %790 = vmatpush.bf16.msra.mxu0 0
      %791 = vmatpush.bf16.msra.mxu0 0
      %792 = vmatpush.bf16.msra.mxu0 0
      %793 = vmatpush.bf16.msra.mxu0 0
      %794 = vmatpush.bf16.msra.mxu0 0
      %795 = vmatpush.bf16.msra.mxu0 0
      %796 = vmatpush.bf16.msra.mxu0 0
      %797 = vmatpush.bf16.msra.mxu0 %v768
      %798 = vmatmul.bf16.gmra.mxu0 %v774
      %v799 = vpop.f32.mrf.mxu0
      %v800 = vadd.f32 0.0, %v799
      %v801 = vpop.f32.mrf.mxu0
      %v802 = vadd.f32 0.0, %v801
      %803 = vdwg.mxu0
      %804 = vmatpush.bf16.msra.mxu0 0
      %805 = vmatpush.bf16.msra.mxu0 0
      %806 = vmatpush.bf16.msra.mxu0 0
      %807 = vmatpush.bf16.msra.mxu0 0
      %808 = vmatpush.bf16.msra.mxu0 0
      %809 = vmatpush.bf16.msra.mxu0 0
      %810 = vmatpush.bf16.msra.mxu0 0
      %811 = vmatpush.bf16.msra.mxu0 %v769
      %812 = vmatmul.bf16.gmra.mxu0 %v774
      %v813 = vpop.f32.mrf.mxu0
      %v814 = vadd.f32 0.0, %v813
      %v815 = vpop.f32.mrf.mxu0
      %v816 = vadd.f32 0.0, %v815
      %817 = vdwg.mxu0
      %v818 = vadd.f32 %v744, %v786
      %v819 = vadd.f32 %v745, %v800
      %v820 = vadd.f32 %v746, %v814
      %v821 = vadd.f32 %v747, %v788
      %v822 = vadd.f32 %v748, %v802
      %v823 = vadd.f32 %v749, %v816
      %s824 = scalar_lea.vmem %s2, 40
      %v825 = vld [vmem:[%s824] sm:$0xf]
      %v826 = vld [vmem:[%s824 + $0x4] sm:$0xf]
      %v829 = vunpack.c.l.b16 %v825
      %v830 = vunpack.c.l.b16 %v826
      %v831 = vpack.c.b16 %v830, %v829
      %832 = vrot.lane.b32.xlu0 %v471, 108
      %v833 = vpop.permute.xlu0 %832
      %834 = vrot.lane.b32.xlu0 %v472, 108
      %v835 = vpop.permute.xlu0 %834
      %836 = vrot.lane.b32.xlu0 %v473, 108
      %v837 = vpop.permute.xlu0 %836
      %838 = vrot.lane.b32.xlu0 %v474, 108
      %v839 = vpop.permute.xlu0 %838
      %vm840 = vcmask 883712
      %v841 = vsel %vm840, %v833, %v835
      %v842 = vsel %vm840, %v835, %v837
      %v843 = vsel %vm840, %v837, %v839
      %v848 = vsel %vm490, %v831, 0
      %850 = vmatpush.bf16.msra.mxu0 0
      %851 = vmatpush.bf16.msra.mxu0 0
      %852 = vmatpush.bf16.msra.mxu0 0
      %853 = vmatpush.bf16.msra.mxu0 0
      %854 = vmatpush.bf16.msra.mxu0 0
      %855 = vmatpush.bf16.msra.mxu0 0
      %856 = vmatpush.bf16.msra.mxu0 0
      %857 = vmatpush.bf16.msra.mxu0 %v841
      %858 = vmatmul.bf16.gmra.mxu0 %v848
      %v859 = vpop.f32.mrf.mxu0
      %v860 = vadd.f32 0.0, %v859
      %v861 = vpop.f32.mrf.mxu0
      %v862 = vadd.f32 0.0, %v861
      %863 = vdwg.mxu0
      %864 = vmatpush.bf16.msra.mxu0 0
      %865 = vmatpush.bf16.msra.mxu0 0
      %866 = vmatpush.bf16.msra.mxu0 0
      %867 = vmatpush.bf16.msra.mxu0 0
      %868 = vmatpush.bf16.msra.mxu0 0
      %869 = vmatpush.bf16.msra.mxu0 0
      %870 = vmatpush.bf16.msra.mxu0 0
      %871 = vmatpush.bf16.msra.mxu0 %v842
      %872 = vmatmul.bf16.gmra.mxu0 %v848
      %v873 = vpop.f32.mrf.mxu0
      %v874 = vadd.f32 0.0, %v873
      %v875 = vpop.f32.mrf.mxu0
      %v876 = vadd.f32 0.0, %v875
      %877 = vdwg.mxu0
      %878 = vmatpush.bf16.msra.mxu0 0
      %879 = vmatpush.bf16.msra.mxu0 0
      %880 = vmatpush.bf16.msra.mxu0 0
      %881 = vmatpush.bf16.msra.mxu0 0
      %882 = vmatpush.bf16.msra.mxu0 0
      %883 = vmatpush.bf16.msra.mxu0 0
      %884 = vmatpush.bf16.msra.mxu0 0
      %885 = vmatpush.bf16.msra.mxu0 %v843
      %886 = vmatmul.bf16.gmra.mxu0 %v848
      %v887 = vpop.f32.mrf.mxu0
      %v888 = vadd.f32 0.0, %v887
      %v889 = vpop.f32.mrf.mxu0
      %v890 = vadd.f32 0.0, %v889
      %891 = vdwg.mxu0
      %v892 = vadd.f32 %v818, %v860
      %v893 = vadd.f32 %v819, %v874
      %v894 = vadd.f32 %v820, %v888
      %v895 = vadd.f32 %v821, %v862
      %v896 = vadd.f32 %v822, %v876
      %v897 = vadd.f32 %v823, %v890
      %s898 = scalar_lea.vmem %s2, 48
      %v899 = vld [vmem:[%s898] sm:$0xf]
      %v900 = vld [vmem:[%s898 + $0x4] sm:$0xf]
      %v903 = vunpack.c.l.b16 %v899
      %v904 = vunpack.c.l.b16 %v900
      %v905 = vpack.c.b16 %v904, %v903
      %906 = vrot.lane.b32.xlu0 %v471, 92
      %v907 = vpop.permute.xlu0 %906
      %908 = vrot.lane.b32.xlu0 %v472, 92
      %v909 = vpop.permute.xlu0 %908
      %910 = vrot.lane.b32.xlu0 %v473, 92
      %v911 = vpop.permute.xlu0 %910
      %912 = vrot.lane.b32.xlu0 %v474, 92
      %v913 = vpop.permute.xlu0 %912
      %vm914 = vcmask 752640
      %v915 = vsel %vm914, %v907, %v909
      %v916 = vsel %vm914, %v909, %v911
      %v917 = vsel %vm914, %v911, %v913
      %v922 = vsel %vm490, %v905, 0
      %924 = vmatpush.bf16.msra.mxu0 0
      %925 = vmatpush.bf16.msra.mxu0 0
      %926 = vmatpush.bf16.msra.mxu0 0
      %927 = vmatpush.bf16.msra.mxu0 0
      %928 = vmatpush.bf16.msra.mxu0 0
      %929 = vmatpush.bf16.msra.mxu0 0
      %930 = vmatpush.bf16.msra.mxu0 0
      %931 = vmatpush.bf16.msra.mxu0 %v915
      %932 = vmatmul.bf16.gmra.mxu0 %v922
      %v933 = vpop.f32.mrf.mxu0
      %v934 = vadd.f32 0.0, %v933
      %v935 = vpop.f32.mrf.mxu0
      %v936 = vadd.f32 0.0, %v935
      %937 = vdwg.mxu0
      %938 = vmatpush.bf16.msra.mxu0 0
      %939 = vmatpush.bf16.msra.mxu0 0
      %940 = vmatpush.bf16.msra.mxu0 0
      %941 = vmatpush.bf16.msra.mxu0 0
      %942 = vmatpush.bf16.msra.mxu0 0
      %943 = vmatpush.bf16.msra.mxu0 0
      %944 = vmatpush.bf16.msra.mxu0 0
      %945 = vmatpush.bf16.msra.mxu0 %v916
      %946 = vmatmul.bf16.gmra.mxu0 %v922
      %v947 = vpop.f32.mrf.mxu0
      %v948 = vadd.f32 0.0, %v947
      %v949 = vpop.f32.mrf.mxu0
      %v950 = vadd.f32 0.0, %v949
      %951 = vdwg.mxu0
      %952 = vmatpush.bf16.msra.mxu0 0
      %953 = vmatpush.bf16.msra.mxu0 0
      %954 = vmatpush.bf16.msra.mxu0 0
      %955 = vmatpush.bf16.msra.mxu0 0
      %956 = vmatpush.bf16.msra.mxu0 0
      %957 = vmatpush.bf16.msra.mxu0 0
      %958 = vmatpush.bf16.msra.mxu0 0
      %959 = vmatpush.bf16.msra.mxu0 %v917
      %960 = vmatmul.bf16.gmra.mxu0 %v922
      %v961 = vpop.f32.mrf.mxu0
      %v962 = vadd.f32 0.0, %v961
      %v963 = vpop.f32.mrf.mxu0
      %v964 = vadd.f32 0.0, %v963
      %965 = vdwg.mxu0
      %v966 = vadd.f32 %v892, %v934
      %v967 = vadd.f32 %v893, %v948
      %v968 = vadd.f32 %v894, %v962
      %v969 = vadd.f32 %v895, %v936
      %v970 = vadd.f32 %v896, %v950
      %v971 = vadd.f32 %v897, %v964
      %s972 = scalar_lea.vmem %s2, 56
      %v973 = vld [vmem:[%s972] sm:$0xf]
      %v974 = vld [vmem:[%s972 + $0x4] sm:$0xf]
      %v977 = vunpack.c.l.b16 %v973
      %v978 = vunpack.c.l.b16 %v974
      %v979 = vpack.c.b16 %v978, %v977
      %980 = vrot.lane.b32.xlu0 %v471, 91
      %v981 = vpop.permute.xlu0 %980
      %982 = vrot.lane.b32.xlu0 %v472, 91
      %v983 = vpop.permute.xlu0 %982
      %984 = vrot.lane.b32.xlu0 %v473, 91
      %v985 = vpop.permute.xlu0 %984
      %986 = vrot.lane.b32.xlu0 %v474, 91
      %v987 = vpop.permute.xlu0 %986
      %vm988 = vcmask 744448
      %v989 = vsel %vm988, %v981, %v983
      %v990 = vsel %vm988, %v983, %v985
      %v991 = vsel %vm988, %v985, %v987
      %v996 = vsel %vm490, %v979, 0
      %998 = vmatpush.bf16.msra.mxu0 0
      %999 = vmatpush.bf16.msra.mxu0 0
      %1000 = vmatpush.bf16.msra.mxu0 0
      %1001 = vmatpush.bf16.msra.mxu0 0
      %1002 = vmatpush.bf16.msra.mxu0 0
      %1003 = vmatpush.bf16.msra.mxu0 0
      %1004 = vmatpush.bf16.msra.mxu0 0
      %1005 = vmatpush.bf16.msra.mxu0 %v989
      %1006 = vmatmul.bf16.gmra.mxu0 %v996
      %v1007 = vpop.f32.mrf.mxu0
      %v1008 = vadd.f32 0.0, %v1007
      %v1009 = vpop.f32.mrf.mxu0
      %v1010 = vadd.f32 0.0, %v1009
      %1011 = vdwg.mxu0
      %1012 = vmatpush.bf16.msra.mxu0 0
      %1013 = vmatpush.bf16.msra.mxu0 0
      %1014 = vmatpush.bf16.msra.mxu0 0
      %1015 = vmatpush.bf16.msra.mxu0 0
      %1016 = vmatpush.bf16.msra.mxu0 0
      %1017 = vmatpush.bf16.msra.mxu0 0
      %1018 = vmatpush.bf16.msra.mxu0 0
      %1019 = vmatpush.bf16.msra.mxu0 %v990
      %1020 = vmatmul.bf16.gmra.mxu0 %v996
      %v1021 = vpop.f32.mrf.mxu0
      %v1022 = vadd.f32 0.0, %v1021
      %v1023 = vpop.f32.mrf.mxu0
      %v1024 = vadd.f32 0.0, %v1023
      %1025 = vdwg.mxu0
      %1026 = vmatpush.bf16.msra.mxu0 0
      %1027 = vmatpush.bf16.msra.mxu0 0
      %1028 = vmatpush.bf16.msra.mxu0 0
      %1029 = vmatpush.bf16.msra.mxu0 0
      %1030 = vmatpush.bf16.msra.mxu0 0
      %1031 = vmatpush.bf16.msra.mxu0 0
      %1032 = vmatpush.bf16.msra.mxu0 0
      %1033 = vmatpush.bf16.msra.mxu0 %v991
      %1034 = vmatmul.bf16.gmra.mxu0 %v996
      %v1035 = vpop.f32.mrf.mxu0
      %v1036 = vadd.f32 0.0, %v1035
      %v1037 = vpop.f32.mrf.mxu0
      %v1038 = vadd.f32 0.0, %v1037
      %1039 = vdwg.mxu0
      %v1040 = vadd.f32 %v966, %v1008
      %v1041 = vadd.f32 %v967, %v1022
      %v1042 = vadd.f32 %v968, %v1036
      %v1043 = vadd.f32 %v969, %v1010
      %v1044 = vadd.f32 %v970, %v1024
      %v1045 = vadd.f32 %v971, %v1038
      %s1046 = scalar_lea.vmem %s2, 64
      %v1047 = vld [vmem:[%s1046] sm:$0xf]
      %v1048 = vld [vmem:[%s1046 + $0x4] sm:$0xf]
      %v1051 = vunpack.c.l.b16 %v1047
      %v1052 = vunpack.c.l.b16 %v1048
      %v1053 = vpack.c.b16 %v1052, %v1051
      %1054 = vrot.lane.b32.xlu0 %v471, 90
      %v1055 = vpop.permute.xlu0 %1054
      %1056 = vrot.lane.b32.xlu0 %v472, 90
      %v1057 = vpop.permute.xlu0 %1056
      %1058 = vrot.lane.b32.xlu0 %v473, 90
      %v1059 = vpop.permute.xlu0 %1058
      %1060 = vrot.lane.b32.xlu0 %v474, 90
      %v1061 = vpop.permute.xlu0 %1060
      %vm1062 = vcmask 736256
      %v1063 = vsel %vm1062, %v1055, %v1057
      %v1064 = vsel %vm1062, %v1057, %v1059
      %v1065 = vsel %vm1062, %v1059, %v1061
      %v1070 = vsel %vm490, %v1053, 0
      %1072 = vmatpush.bf16.msra.mxu0 0
      %1073 = vmatpush.bf16.msra.mxu0 0
      %1074 = vmatpush.bf16.msra.mxu0 0
      %1075 = vmatpush.bf16.msra.mxu0 0
      %1076 = vmatpush.bf16.msra.mxu0 0
      %1077 = vmatpush.bf16.msra.mxu0 0
      %1078 = vmatpush.bf16.msra.mxu0 0
      %1079 = vmatpush.bf16.msra.mxu0 %v1063
      %1080 = vmatmul.bf16.gmra.mxu0 %v1070
      %v1081 = vpop.f32.mrf.mxu0
      %v1082 = vadd.f32 0.0, %v1081
      %v1083 = vpop.f32.mrf.mxu0
      %v1084 = vadd.f32 0.0, %v1083
      %1085 = vdwg.mxu0
      %1086 = vmatpush.bf16.msra.mxu0 0
      %1087 = vmatpush.bf16.msra.mxu0 0
      %1088 = vmatpush.bf16.msra.mxu0 0
      %1089 = vmatpush.bf16.msra.mxu0 0
      %1090 = vmatpush.bf16.msra.mxu0 0
      %1091 = vmatpush.bf16.msra.mxu0 0
      %1092 = vmatpush.bf16.msra.mxu0 0
      %1093 = vmatpush.bf16.msra.mxu0 %v1064
      %1094 = vmatmul.bf16.gmra.mxu0 %v1070
      %v1095 = vpop.f32.mrf.mxu0
      %v1096 = vadd.f32 0.0, %v1095
      %v1097 = vpop.f32.mrf.mxu0
      %v1098 = vadd.f32 0.0, %v1097
      %1099 = vdwg.mxu0
      %1100 = vmatpush.bf16.msra.mxu0 0
      %1101 = vmatpush.bf16.msra.mxu0 0
      %1102 = vmatpush.bf16.msra.mxu0 0
      %1103 = vmatpush.bf16.msra.mxu0 0
      %1104 = vmatpush.bf16.msra.mxu0 0
      %1105 = vmatpush.bf16.msra.mxu0 0
      %1106 = vmatpush.bf16.msra.mxu0 0
      %1107 = vmatpush.bf16.msra.mxu0 %v1065
      %1108 = vmatmul.bf16.gmra.mxu0 %v1070
      %v1109 = vpop.f32.mrf.mxu0
      %v1110 = vadd.f32 0.0, %v1109
      %v1111 = vpop.f32.mrf.mxu0
      %v1112 = vadd.f32 0.0, %v1111
      %1113 = vdwg.mxu0
      %v1114 = vadd.f32 %v1040, %v1082
      %v1115 = vadd.f32 %v1041, %v1096
      %v1116 = vadd.f32 %v1042, %v1110
      %v1117 = vadd.f32 %v1043, %v1084
      %v1118 = vadd.f32 %v1044, %v1098
      %v1119 = vadd.f32 %v1045, %v1112
      %v1120 = vld [vmem:[%s3] sm:$0xff]
      %v1121 = vld [vmem:[%s3 + $0x8] sm:$0xff]
      %1123 = vset.pattern.permute.xlu0 0
      %1124 = vperm.xlu0 %1123, %v1120
      %v1125 = vpop.permute.xlu0 %1124
      %1128 = vset.pattern.permute.xlu0 0
      %1129 = vperm.xlu0 %1128, %v1121
      %v1130 = vpop.permute.xlu0 %1129
      %v1132 = vmul.f32 %v1114, %v1125
      %v1133 = vmul.f32 %v1115, %v1125
      %v1134 = vmul.f32 %v1116, %v1125
      %v1135 = vmul.f32 %v1117, %v1130
      %v1136 = vmul.f32 %v1118, %v1130
      %v1137 = vmul.f32 %v1119, %v1130
      %v1138 = vld [vmem:[%s4] sm:$0xff]
      %v1139 = vld [vmem:[%s4 + $0x8] sm:$0xff]
      %1141 = vset.pattern.permute.xlu0 0
      %1142 = vperm.xlu0 %1141, %v1138
      %v1143 = vpop.permute.xlu0 %1142
      %1146 = vset.pattern.permute.xlu0 0
      %1147 = vperm.xlu0 %1146, %v1139
      %v1148 = vpop.permute.xlu0 %1147
      %v1150 = vadd.f32 %v1132, %v1143
      %v1151 = vadd.f32 %v1133, %v1143
      %v1152 = vadd.f32 %v1134, %v1143
      %v1153 = vadd.f32 %v1135, %v1148
      %v1154 = vadd.f32 %v1136, %v1148
      %v1155 = vadd.f32 %v1137, %v1148
      %v1156 = vmax.f32 %v1150, 0.0
      %v1157 = vmax.f32 %v1151, 0.0
      %v1158 = vmax.f32 %v1152, 0.0
      %v1159 = vmax.f32 %v1153, 0.0
      %v1160 = vmax.f32 %v1154, 0.0
      %v1161 = vmax.f32 %v1155, 0.0
      %v1162 = vld [vmem:[%s421] sm:$0x7]
      %v1164 = vperm.slane %v1162, 0
      %v1165 = vperm.slane %v1162, 1
      %v1166 = vperm.slane %v1162, 2
      %v1170 = vmul.f32 %v1156, %v1164
      %v1171 = vmul.f32 %v1157, %v1165
      %v1172 = vmul.f32 %v1158, %v1166
      %v1173 = vmul.f32 %v1159, %v1164
      %v1174 = vmul.f32 %v1160, %v1165
      %v1175 = vmul.f32 %v1161, %v1166
      %vm1176 = vcmask 3072
      %1177 = vst.msk [vmem:[#allocation2] sm:$0xf] %vm1176, 0
      %1178 = vst.msk [vmem:[#allocation2 + $0x10] sm:$0xf] %vm1176, 0
      %v1179 = vpack.c.bf16 %v1171, %v1170
      %v1180 = vpack.c.bf16 %v1172, %v1172
      %v1181 = vpack.c.bf16 %v1174, %v1173
      %v1182 = vpack.c.bf16 %v1175, %v1175
      %1187 = vrot.lane.b32.xlu0 %v1179, 1
      %v1188 = vpop.permute.xlu0 %1187
      %1189 = vrot.lane.b32.xlu0 %v1180, 1
      %v1190 = vpop.permute.xlu0 %1189
      %1191 = vrot.lane.b32.xlu0 %v1181, 1
      %v1192 = vpop.permute.xlu0 %1191
      %1193 = vrot.lane.b32.xlu0 %v1182, 1
      %v1194 = vpop.permute.xlu0 %1193
      %v1195 = vrot.slane %v1188, 4
      %v1196 = vrot.slane %v1190, 4
      %v1197 = vrot.slane %v1192, 4
      %v1198 = vrot.slane %v1194, 4
      %vm1199 = vcmask 7168
      %v1200 = vsel %vm1199, %v1195, %v1188
      %vm1201 = vcmask 1043456
      %v1202 = vsel %vm1201, %v1195, %v1196
      %v1203 = vsel %vm1199, %v1202, %v1190
      %v1204 = vsel %vm1199, %v1197, %v1192
      %v1205 = vsel %vm1201, %v1197, %v1198
      %v1206 = vsel %vm1199, %v1205, %v1194
      %vm1211 = vcmask 1043464
      %vm1212 = vcmask 1047556
      %vm1213 = vmor %vm1212, %vm1211
      %1214 = vst.msk [vmem:[#allocation2] sm:$0xff] %vm1213, %v1200
      %vm1215 = vcmask 1043456
      %vm1216 = vcmask 7172
      %vm1217 = vmor %vm1216, %vm1215
      %1218 = vst.msk [vmem:[#allocation2 + $0x8] sm:$0xff] %vm1217, %v1203
      %1219 = vst.msk [vmem:[#allocation2 + $0x10] sm:$0xff] %vm1213, %v1204
      %1220 = vst.msk [vmem:[#allocation2 + $0x18] sm:$0xff] %vm1217, %v1206
      %1221 = vst.msk [vmem:[#allocation2 + $0xc] sm:$0xf] %vm1211, 0
      %1222 = vst.msk [vmem:[#allocation2 + $0x1c] sm:$0xf] %vm1211, 0
      %v1223 = vld [vmem:[%s5] sm:$0xf]
      %v1224 = vld [vmem:[#allocation2] sm:$0xff]
      %v1225 = vld [vmem:[#allocation2 + $0x8] sm:$0xf]
      %v1226 = vld [vmem:[#allocation2 + $0x10] sm:$0xff]
      %v1227 = vld [vmem:[#allocation2 + $0x18] sm:$0xf]
      %s1228 = scalar_lea.vmem %s5, 4
      %v1229 = vld [vmem:[%s1228] sm:$0xf]
      %v1230 = vld [vmem:[#allocation2] sm:$0xff]
      %v1231 = vld [vmem:[#allocation2 + $0x8] sm:$0xff]
      %v1232 = vld [vmem:[#allocation2 + $0x10] sm:$0xff]
      %v1233 = vld [vmem:[#allocation2 + $0x18] sm:$0xff]
      %v1238 = vunpack.c.l.b16 %v1230
      %v1239 = vunpack.c.h.b16 %v1230
      %v1240 = vunpack.c.l.b16 %v1231
      %v1241 = vunpack.c.h.b16 %v1231
      %v1242 = vunpack.c.l.b16 %v1232
      %v1243 = vunpack.c.h.b16 %v1232
      %v1244 = vunpack.c.l.b16 %v1233
      %v1245 = vunpack.c.h.b16 %v1233
      %v1246 = vpack.c.b16 %v1242, %v1238
      %v1247 = vpack.c.b16 %v1243, %v1239
      %v1248 = vpack.c.b16 %v1244, %v1240
      %v1249 = vpack.c.b16 %v1245, %v1241
      %1250 = vrot.lane.b32.xlu0 %v1246, 127
      %v1251 = vpop.permute.xlu0 %1250
      %1252 = vrot.lane.b32.xlu0 %v1247, 127
      %v1253 = vpop.permute.xlu0 %1252
      %1254 = vrot.lane.b32.xlu0 %v1248, 127
      %v1255 = vpop.permute.xlu0 %1254
      %1256 = vrot.lane.b32.xlu0 %v1249, 127
      %v1257 = vpop.permute.xlu0 %1256
      %v1258 = vsel %vm483, %v1251, %v1253
      %v1259 = vsel %vm483, %v1253, %v1255
      %v1260 = vsel %vm483, %v1255, %v1257
      %v1265 = vsel %vm490, %v1229, 0
      %1267 = vmatpush.bf16.msra.mxu0 0
      %1268 = vmatpush.bf16.msra.mxu0 0
      %1269 = vmatpush.bf16.msra.mxu0 0
      %1270 = vmatpush.bf16.msra.mxu0 0
      %1271 = vmatpush.bf16.msra.mxu0 0
      %1272 = vmatpush.bf16.msra.mxu0 0
      %1273 = vmatpush.bf16.msra.mxu0 0
      %1274 = vmatpush.bf16.msra.mxu0 %v1258
      %1275 = vmatmul.bf16.gmra.mxu0 %v1265
      %v1276 = vpop.f32.mrf.mxu0
      %v1277 = vadd.f32 0.0, %v1276
      %v1278 = vpop.f32.mrf.mxu0
      %1279 = vdwg.mxu0
      %1280 = vmatpush.bf16.msra.mxu0 0
      %1281 = vmatpush.bf16.msra.mxu0 0
      %1282 = vmatpush.bf16.msra.mxu0 0
      %1283 = vmatpush.bf16.msra.mxu0 0
      %1284 = vmatpush.bf16.msra.mxu0 0
      %1285 = vmatpush.bf16.msra.mxu0 0
      %1286 = vmatpush.bf16.msra.mxu0 0
      %1287 = vmatpush.bf16.msra.mxu0 %v1259
      %1288 = vmatmul.bf16.gmra.mxu0 %v1265
      %v1289 = vpop.f32.mrf.mxu0
      %v1290 = vadd.f32 0.0, %v1289
      %v1291 = vpop.f32.mrf.mxu0
      %1292 = vdwg.mxu0
      %1293 = vmatpush.bf16.msra.mxu0 0
      %1294 = vmatpush.bf16.msra.mxu0 0
      %1295 = vmatpush.bf16.msra.mxu0 0
      %1296 = vmatpush.bf16.msra.mxu0 0
      %1297 = vmatpush.bf16.msra.mxu0 0
      %1298 = vmatpush.bf16.msra.mxu0 0
      %1299 = vmatpush.bf16.msra.mxu0 0
      %1300 = vmatpush.bf16.msra.mxu0 %v1260
      %1301 = vmatmul.bf16.gmra.mxu0 %v1265
      %v1302 = vpop.f32.mrf.mxu0
      %v1303 = vadd.f32 0.0, %v1302
      %v1304 = vpop.f32.mrf.mxu0
      %1305 = vdwg.mxu0
      %v1310 = vunpack.c.l.b16 %v1224
      %v1311 = vunpack.c.h.b16 %v1224
      %v1312 = vunpack.c.l.b16 %v1225
      %v1313 = vunpack.c.l.b16 %v1226
      %v1314 = vunpack.c.h.b16 %v1226
      %v1315 = vunpack.c.l.b16 %v1227
      %v1316 = vpack.c.b16 %v1313, %v1310
      %v1317 = vpack.c.b16 %v1314, %v1311
      %v1318 = vpack.c.b16 %v1315, %v1312
      %v1323 = vsel %vm490, %v1223, 0
      %1325 = vmatpush.bf16.msra.mxu0 0
      %1326 = vmatpush.bf16.msra.mxu0 0
      %1327 = vmatpush.bf16.msra.mxu0 0
      %1328 = vmatpush.bf16.msra.mxu0 0
      %1329 = vmatpush.bf16.msra.mxu0 0
      %1330 = vmatpush.bf16.msra.mxu0 0
      %1331 = vmatpush.bf16.msra.mxu0 0
      %1332 = vmatpush.bf16.msra.mxu0 %v1316
      %1333 = vmatmul.bf16.gmra.mxu0 %v1323
      %v1334 = vpop.f32.mrf.mxu0
      %v1335 = vadd.f32 %v1277, %v1334
      %v1336 = vpop.f32.mrf.mxu0
      %1337 = vdwg.mxu0
      %1338 = vmatpush.bf16.msra.mxu0 0
      %1339 = vmatpush.bf16.msra.mxu0 0
      %1340 = vmatpush.bf16.msra.mxu0 0
      %1341 = vmatpush.bf16.msra.mxu0 0
      %1342 = vmatpush.bf16.msra.mxu0 0
      %1343 = vmatpush.bf16.msra.mxu0 0
      %1344 = vmatpush.bf16.msra.mxu0 0
      %1345 = vmatpush.bf16.msra.mxu0 %v1317
      %1346 = vmatmul.bf16.gmra.mxu0 %v1323
      %v1347 = vpop.f32.mrf.mxu0
      %v1348 = vadd.f32 %v1290, %v1347
      %v1349 = vpop.f32.mrf.mxu0
      %1350 = vdwg.mxu0
      %1351 = vmatpush.bf16.msra.mxu0 0
      %1352 = vmatpush.bf16.msra.mxu0 0
      %1353 = vmatpush.bf16.msra.mxu0 0
      %1354 = vmatpush.bf16.msra.mxu0 0
      %1355 = vmatpush.bf16.msra.mxu0 0
      %1356 = vmatpush.bf16.msra.mxu0 0
      %1357 = vmatpush.bf16.msra.mxu0 0
      %1358 = vmatpush.bf16.msra.mxu0 %v1318
      %1359 = vmatmul.bf16.gmra.mxu0 %v1323
      %v1360 = vpop.f32.mrf.mxu0
      %v1361 = vadd.f32 %v1303, %v1360
      %v1362 = vpop.f32.mrf.mxu0
      %1363 = vdwg.mxu0
      %s1364 = scalar_lea.vmem %s5, 8
      %v1365 = vld [vmem:[%s1364] sm:$0xf]
      %1366 = vrot.lane.b32.xlu0 %v1246, 126
      %v1367 = vpop.permute.xlu0 %1366
      %1368 = vrot.lane.b32.xlu0 %v1247, 126
      %v1369 = vpop.permute.xlu0 %1368
      %1370 = vrot.lane.b32.xlu0 %v1248, 126
      %v1371 = vpop.permute.xlu0 %1370
      %1372 = vrot.lane.b32.xlu0 %v1249, 126
      %v1373 = vpop.permute.xlu0 %1372
      %v1374 = vsel %vm618, %v1367, %v1369
      %v1375 = vsel %vm618, %v1369, %v1371
      %v1376 = vsel %vm618, %v1371, %v1373
      %v1381 = vsel %vm490, %v1365, 0
      %1383 = vmatpush.bf16.msra.mxu0 0
      %1384 = vmatpush.bf16.msra.mxu0 0
      %1385 = vmatpush.bf16.msra.mxu0 0
      %1386 = vmatpush.bf16.msra.mxu0 0
      %1387 = vmatpush.bf16.msra.mxu0 0
      %1388 = vmatpush.bf16.msra.mxu0 0
      %1389 = vmatpush.bf16.msra.mxu0 0
      %1390 = vmatpush.bf16.msra.mxu0 %v1374
      %1391 = vmatmul.bf16.gmra.mxu0 %v1381
      %v1392 = vpop.f32.mrf.mxu0
      %v1393 = vadd.f32 0.0, %v1392
      %v1394 = vpop.f32.mrf.mxu0
      %1395 = vdwg.mxu0
      %1396 = vmatpush.bf16.msra.mxu0 0
      %1397 = vmatpush.bf16.msra.mxu0 0
      %1398 = vmatpush.bf16.msra.mxu0 0
      %1399 = vmatpush.bf16.msra.mxu0 0
      %1400 = vmatpush.bf16.msra.mxu0 0
      %1401 = vmatpush.bf16.msra.mxu0 0
      %1402 = vmatpush.bf16.msra.mxu0 0
      %1403 = vmatpush.bf16.msra.mxu0 %v1375
      %1404 = vmatmul.bf16.gmra.mxu0 %v1381
      %v1405 = vpop.f32.mrf.mxu0
      %v1406 = vadd.f32 0.0, %v1405
      %v1407 = vpop.f32.mrf.mxu0
      %1408 = vdwg.mxu0
      %1409 = vmatpush.bf16.msra.mxu0 0
      %1410 = vmatpush.bf16.msra.mxu0 0
      %1411 = vmatpush.bf16.msra.mxu0 0
      %1412 = vmatpush.bf16.msra.mxu0 0
      %1413 = vmatpush.bf16.msra.mxu0 0
      %1414 = vmatpush.bf16.msra.mxu0 0
      %1415 = vmatpush.bf16.msra.mxu0 0
      %1416 = vmatpush.bf16.msra.mxu0 %v1376
      %1417 = vmatmul.bf16.gmra.mxu0 %v1381
      %v1418 = vpop.f32.mrf.mxu0
      %v1419 = vadd.f32 0.0, %v1418
      %v1420 = vpop.f32.mrf.mxu0
      %1421 = vdwg.mxu0
      %v1422 = vadd.f32 %v1335, %v1393
      %v1423 = vadd.f32 %v1348, %v1406
      %v1424 = vadd.f32 %v1361, %v1419
      %s1425 = scalar_lea.vmem %s5, 12
      %v1426 = vld [vmem:[%s1425] sm:$0xf]
      %1427 = vrot.lane.b32.xlu0 %v1246, 110
      %v1428 = vpop.permute.xlu0 %1427
      %1429 = vrot.lane.b32.xlu0 %v1247, 110
      %v1430 = vpop.permute.xlu0 %1429
      %1431 = vrot.lane.b32.xlu0 %v1248, 110
      %v1432 = vpop.permute.xlu0 %1431
      %1433 = vrot.lane.b32.xlu0 %v1249, 110
      %v1434 = vpop.permute.xlu0 %1433
      %v1435 = vsel %vm692, %v1428, %v1430
      %v1436 = vsel %vm692, %v1430, %v1432
      %v1437 = vsel %vm692, %v1432, %v1434
      %v1442 = vsel %vm490, %v1426, 0
      %1444 = vmatpush.bf16.msra.mxu0 0
      %1445 = vmatpush.bf16.msra.mxu0 0
      %1446 = vmatpush.bf16.msra.mxu0 0
      %1447 = vmatpush.bf16.msra.mxu0 0
      %1448 = vmatpush.bf16.msra.mxu0 0
      %1449 = vmatpush.bf16.msra.mxu0 0
      %1450 = vmatpush.bf16.msra.mxu0 0
      %1451 = vmatpush.bf16.msra.mxu0 %v1435
      %1452 = vmatmul.bf16.gmra.mxu0 %v1442
      %v1453 = vpop.f32.mrf.mxu0
      %v1454 = vadd.f32 0.0, %v1453
      %v1455 = vpop.f32.mrf.mxu0
      %1456 = vdwg.mxu0
      %1457 = vmatpush.bf16.msra.mxu0 0
      %1458 = vmatpush.bf16.msra.mxu0 0
      %1459 = vmatpush.bf16.msra.mxu0 0
      %1460 = vmatpush.bf16.msra.mxu0 0
      %1461 = vmatpush.bf16.msra.mxu0 0
      %1462 = vmatpush.bf16.msra.mxu0 0
      %1463 = vmatpush.bf16.msra.mxu0 0
      %1464 = vmatpush.bf16.msra.mxu0 %v1436
      %1465 = vmatmul.bf16.gmra.mxu0 %v1442
      %v1466 = vpop.f32.mrf.mxu0
      %v1467 = vadd.f32 0.0, %v1466
      %v1468 = vpop.f32.mrf.mxu0
      %1469 = vdwg.mxu0
      %1470 = vmatpush.bf16.msra.mxu0 0
      %1471 = vmatpush.bf16.msra.mxu0 0
      %1472 = vmatpush.bf16.msra.mxu0 0
      %1473 = vmatpush.bf16.msra.mxu0 0
      %1474 = vmatpush.bf16.msra.mxu0 0
      %1475 = vmatpush.bf16.msra.mxu0 0
      %1476 = vmatpush.bf16.msra.mxu0 0
      %1477 = vmatpush.bf16.msra.mxu0 %v1437
      %1478 = vmatmul.bf16.gmra.mxu0 %v1442
      %v1479 = vpop.f32.mrf.mxu0
      %v1480 = vadd.f32 0.0, %v1479
      %v1481 = vpop.f32.mrf.mxu0
      %1482 = vdwg.mxu0
      %v1483 = vadd.f32 %v1422, %v1454
      %v1484 = vadd.f32 %v1423, %v1467
      %v1485 = vadd.f32 %v1424, %v1480
      %s1486 = scalar_lea.vmem %s5, 16
      %v1487 = vld [vmem:[%s1486] sm:$0xf]
      %1488 = vrot.lane.b32.xlu0 %v1246, 109
      %v1489 = vpop.permute.xlu0 %1488
      %1490 = vrot.lane.b32.xlu0 %v1247, 109
      %v1491 = vpop.permute.xlu0 %1490
      %1492 = vrot.lane.b32.xlu0 %v1248, 109
      %v1493 = vpop.permute.xlu0 %1492
      %1494 = vrot.lane.b32.xlu0 %v1249, 109
      %v1495 = vpop.permute.xlu0 %1494
      %v1496 = vsel %vm766, %v1489, %v1491
      %v1497 = vsel %vm766, %v1491, %v1493
      %v1498 = vsel %vm766, %v1493, %v1495
      %v1503 = vsel %vm490, %v1487, 0
      %1505 = vmatpush.bf16.msra.mxu0 0
      %1506 = vmatpush.bf16.msra.mxu0 0
      %1507 = vmatpush.bf16.msra.mxu0 0
      %1508 = vmatpush.bf16.msra.mxu0 0
      %1509 = vmatpush.bf16.msra.mxu0 0
      %1510 = vmatpush.bf16.msra.mxu0 0
      %1511 = vmatpush.bf16.msra.mxu0 0
      %1512 = vmatpush.bf16.msra.mxu0 %v1496
      %1513 = vmatmul.bf16.gmra.mxu0 %v1503
      %v1514 = vpop.f32.mrf.mxu0
      %v1515 = vadd.f32 0.0, %v1514
      %v1516 = vpop.f32.mrf.mxu0
      %1517 = vdwg.mxu0
      %1518 = vmatpush.bf16.msra.mxu0 0
      %1519 = vmatpush.bf16.msra.mxu0 0
      %1520 = vmatpush.bf16.msra.mxu0 0
      %1521 = vmatpush.bf16.msra.mxu0 0
      %1522 = vmatpush.bf16.msra.mxu0 0
      %1523 = vmatpush.bf16.msra.mxu0 0
      %1524 = vmatpush.bf16.msra.mxu0 0
      %1525 = vmatpush.bf16.msra.mxu0 %v1497
      %1526 = vmatmul.bf16.gmra.mxu0 %v1503
      %v1527 = vpop.f32.mrf.mxu0
      %v1528 = vadd.f32 0.0, %v1527
      %v1529 = vpop.f32.mrf.mxu0
      %1530 = vdwg.mxu0
      %1531 = vmatpush.bf16.msra.mxu0 0
      %1532 = vmatpush.bf16.msra.mxu0 0
      %1533 = vmatpush.bf16.msra.mxu0 0
      %1534 = vmatpush.bf16.msra.mxu0 0
      %1535 = vmatpush.bf16.msra.mxu0 0
      %1536 = vmatpush.bf16.msra.mxu0 0
      %1537 = vmatpush.bf16.msra.mxu0 0
      %1538 = vmatpush.bf16.msra.mxu0 %v1498
      %1539 = vmatmul.bf16.gmra.mxu0 %v1503
      %v1540 = vpop.f32.mrf.mxu0
      %v1541 = vadd.f32 0.0, %v1540
      %v1542 = vpop.f32.mrf.mxu0
      %1543 = vdwg.mxu0
      %v1544 = vadd.f32 %v1483, %v1515
      %v1545 = vadd.f32 %v1484, %v1528
      %v1546 = vadd.f32 %v1485, %v1541
      %s1547 = scalar_lea.vmem %s5, 20
      %v1548 = vld [vmem:[%s1547] sm:$0xf]
      %1549 = vrot.lane.b32.xlu0 %v1246, 108
      %v1550 = vpop.permute.xlu0 %1549
      %1551 = vrot.lane.b32.xlu0 %v1247, 108
      %v1552 = vpop.permute.xlu0 %1551
      %1553 = vrot.lane.b32.xlu0 %v1248, 108
      %v1554 = vpop.permute.xlu0 %1553
      %1555 = vrot.lane.b32.xlu0 %v1249, 108
      %v1556 = vpop.permute.xlu0 %1555
      %v1557 = vsel %vm840, %v1550, %v1552
      %v1558 = vsel %vm840, %v1552, %v1554
      %v1559 = vsel %vm840, %v1554, %v1556
      %v1564 = vsel %vm490, %v1548, 0
      %1566 = vmatpush.bf16.msra.mxu0 0
      %1567 = vmatpush.bf16.msra.mxu0 0
      %1568 = vmatpush.bf16.msra.mxu0 0
      %1569 = vmatpush.bf16.msra.mxu0 0
      %1570 = vmatpush.bf16.msra.mxu0 0
      %1571 = vmatpush.bf16.msra.mxu0 0
      %1572 = vmatpush.bf16.msra.mxu0 0
      %1573 = vmatpush.bf16.msra.mxu0 %v1557
      %1574 = vmatmul.bf16.gmra.mxu0 %v1564
      %v1575 = vpop.f32.mrf.mxu0
      %v1576 = vadd.f32 0.0, %v1575
      %v1577 = vpop.f32.mrf.mxu0
      %1578 = vdwg.mxu0
      %1579 = vmatpush.bf16.msra.mxu0 0
      %1580 = vmatpush.bf16.msra.mxu0 0
      %1581 = vmatpush.bf16.msra.mxu0 0
      %1582 = vmatpush.bf16.msra.mxu0 0
      %1583 = vmatpush.bf16.msra.mxu0 0
      %1584 = vmatpush.bf16.msra.mxu0 0
      %1585 = vmatpush.bf16.msra.mxu0 0
      %1586 = vmatpush.bf16.msra.mxu0 %v1558
      %1587 = vmatmul.bf16.gmra.mxu0 %v1564
      %v1588 = vpop.f32.mrf.mxu0
      %v1589 = vadd.f32 0.0, %v1588
      %v1590 = vpop.f32.mrf.mxu0
      %1591 = vdwg.mxu0
      %1592 = vmatpush.bf16.msra.mxu0 0
      %1593 = vmatpush.bf16.msra.mxu0 0
      %1594 = vmatpush.bf16.msra.mxu0 0
      %1595 = vmatpush.bf16.msra.mxu0 0
      %1596 = vmatpush.bf16.msra.mxu0 0
      %1597 = vmatpush.bf16.msra.mxu0 0
      %1598 = vmatpush.bf16.msra.mxu0 0
      %1599 = vmatpush.bf16.msra.mxu0 %v1559
      %1600 = vmatmul.bf16.gmra.mxu0 %v1564
      %v1601 = vpop.f32.mrf.mxu0
      %v1602 = vadd.f32 0.0, %v1601
      %v1603 = vpop.f32.mrf.mxu0
      %1604 = vdwg.mxu0
      %v1605 = vadd.f32 %v1544, %v1576
      %v1606 = vadd.f32 %v1545, %v1589
      %v1607 = vadd.f32 %v1546, %v1602
      %s1608 = scalar_lea.vmem %s5, 24
      %v1609 = vld [vmem:[%s1608] sm:$0xf]
      %1610 = vrot.lane.b32.xlu0 %v1246, 92
      %v1611 = vpop.permute.xlu0 %1610
      %1612 = vrot.lane.b32.xlu0 %v1247, 92
      %v1613 = vpop.permute.xlu0 %1612
      %1614 = vrot.lane.b32.xlu0 %v1248, 92
      %v1615 = vpop.permute.xlu0 %1614
      %1616 = vrot.lane.b32.xlu0 %v1249, 92
      %v1617 = vpop.permute.xlu0 %1616
      %v1618 = vsel %vm914, %v1611, %v1613
      %v1619 = vsel %vm914, %v1613, %v1615
      %v1620 = vsel %vm914, %v1615, %v1617
      %v1625 = vsel %vm490, %v1609, 0
      %1627 = vmatpush.bf16.msra.mxu0 0
      %1628 = vmatpush.bf16.msra.mxu0 0
      %1629 = vmatpush.bf16.msra.mxu0 0
      %1630 = vmatpush.bf16.msra.mxu0 0
      %1631 = vmatpush.bf16.msra.mxu0 0
      %1632 = vmatpush.bf16.msra.mxu0 0
      %1633 = vmatpush.bf16.msra.mxu0 0
      %1634 = vmatpush.bf16.msra.mxu0 %v1618
      %1635 = vmatmul.bf16.gmra.mxu0 %v1625
      %v1636 = vpop.f32.mrf.mxu0
      %v1637 = vadd.f32 0.0, %v1636
      %v1638 = vpop.f32.mrf.mxu0
      %1639 = vdwg.mxu0
      %1640 = vmatpush.bf16.msra.mxu0 0
      %1641 = vmatpush.bf16.msra.mxu0 0
      %1642 = vmatpush.bf16.msra.mxu0 0
      %1643 = vmatpush.bf16.msra.mxu0 0
      %1644 = vmatpush.bf16.msra.mxu0 0
      %1645 = vmatpush.bf16.msra.mxu0 0
      %1646 = vmatpush.bf16.msra.mxu0 0
      %1647 = vmatpush.bf16.msra.mxu0 %v1619
      %1648 = vmatmul.bf16.gmra.mxu0 %v1625
      %v1649 = vpop.f32.mrf.mxu0
      %v1650 = vadd.f32 0.0, %v1649
      %v1651 = vpop.f32.mrf.mxu0
      %1652 = vdwg.mxu0
      %1653 = vmatpush.bf16.msra.mxu0 0
      %1654 = vmatpush.bf16.msra.mxu0 0
      %1655 = vmatpush.bf16.msra.mxu0 0
      %1656 = vmatpush.bf16.msra.mxu0 0
      %1657 = vmatpush.bf16.msra.mxu0 0
      %1658 = vmatpush.bf16.msra.mxu0 0
      %1659 = vmatpush.bf16.msra.mxu0 0
      %1660 = vmatpush.bf16.msra.mxu0 %v1620
      %1661 = vmatmul.bf16.gmra.mxu0 %v1625
      %v1662 = vpop.f32.mrf.mxu0
      %v1663 = vadd.f32 0.0, %v1662
      %v1664 = vpop.f32.mrf.mxu0
      %1665 = vdwg.mxu0
      %v1666 = vadd.f32 %v1605, %v1637
      %v1667 = vadd.f32 %v1606, %v1650
      %v1668 = vadd.f32 %v1607, %v1663
      %s1669 = scalar_lea.vmem %s5, 28
      %v1670 = vld [vmem:[%s1669] sm:$0xf]
      %1671 = vrot.lane.b32.xlu0 %v1246, 91
      %v1672 = vpop.permute.xlu0 %1671
      %1673 = vrot.lane.b32.xlu0 %v1247, 91
      %v1674 = vpop.permute.xlu0 %1673
      %1675 = vrot.lane.b32.xlu0 %v1248, 91
      %v1676 = vpop.permute.xlu0 %1675
      %1677 = vrot.lane.b32.xlu0 %v1249, 91
      %v1678 = vpop.permute.xlu0 %1677
      %v1679 = vsel %vm988, %v1672, %v1674
      %v1680 = vsel %vm988, %v1674, %v1676
      %v1681 = vsel %vm988, %v1676, %v1678
      %v1686 = vsel %vm490, %v1670, 0
      %1688 = vmatpush.bf16.msra.mxu0 0
      %1689 = vmatpush.bf16.msra.mxu0 0
      %1690 = vmatpush.bf16.msra.mxu0 0
      %1691 = vmatpush.bf16.msra.mxu0 0
      %1692 = vmatpush.bf16.msra.mxu0 0
      %1693 = vmatpush.bf16.msra.mxu0 0
      %1694 = vmatpush.bf16.msra.mxu0 0
      %1695 = vmatpush.bf16.msra.mxu0 %v1679
      %1696 = vmatmul.bf16.gmra.mxu0 %v1686
      %v1697 = vpop.f32.mrf.mxu0
      %v1698 = vadd.f32 0.0, %v1697
      %v1699 = vpop.f32.mrf.mxu0
      %1700 = vdwg.mxu0
      %1701 = vmatpush.bf16.msra.mxu0 0
      %1702 = vmatpush.bf16.msra.mxu0 0
      %1703 = vmatpush.bf16.msra.mxu0 0
      %1704 = vmatpush.bf16.msra.mxu0 0
      %1705 = vmatpush.bf16.msra.mxu0 0
      %1706 = vmatpush.bf16.msra.mxu0 0
      %1707 = vmatpush.bf16.msra.mxu0 0
      %1708 = vmatpush.bf16.msra.mxu0 %v1680
      %1709 = vmatmul.bf16.gmra.mxu0 %v1686
      %v1710 = vpop.f32.mrf.mxu0
      %v1711 = vadd.f32 0.0, %v1710
      %v1712 = vpop.f32.mrf.mxu0
      %1713 = vdwg.mxu0
      %1714 = vmatpush.bf16.msra.mxu0 0
      %1715 = vmatpush.bf16.msra.mxu0 0
      %1716 = vmatpush.bf16.msra.mxu0 0
      %1717 = vmatpush.bf16.msra.mxu0 0
      %1718 = vmatpush.bf16.msra.mxu0 0
      %1719 = vmatpush.bf16.msra.mxu0 0
      %1720 = vmatpush.bf16.msra.mxu0 0
      %1721 = vmatpush.bf16.msra.mxu0 %v1681
      %1722 = vmatmul.bf16.gmra.mxu0 %v1686
      %v1723 = vpop.f32.mrf.mxu0
      %v1724 = vadd.f32 0.0, %v1723
      %v1725 = vpop.f32.mrf.mxu0
      %1726 = vdwg.mxu0
      %v1727 = vadd.f32 %v1666, %v1698
      %v1728 = vadd.f32 %v1667, %v1711
      %v1729 = vadd.f32 %v1668, %v1724
      %s1730 = scalar_lea.vmem %s5, 32
      %v1731 = vld [vmem:[%s1730] sm:$0xf]
      %1732 = vrot.lane.b32.xlu0 %v1246, 90
      %v1733 = vpop.permute.xlu0 %1732
      %1734 = vrot.lane.b32.xlu0 %v1247, 90
      %v1735 = vpop.permute.xlu0 %1734
      %1736 = vrot.lane.b32.xlu0 %v1248, 90
      %v1737 = vpop.permute.xlu0 %1736
      %1738 = vrot.lane.b32.xlu0 %v1249, 90
      %v1739 = vpop.permute.xlu0 %1738
      %v1740 = vsel %vm1062, %v1733, %v1735
      %v1741 = vsel %vm1062, %v1735, %v1737
      %v1742 = vsel %vm1062, %v1737, %v1739
      %v1747 = vsel %vm490, %v1731, 0
      %1749 = vmatpush.bf16.msra.mxu0 0
      %1750 = vmatpush.bf16.msra.mxu0 0
      %1751 = vmatpush.bf16.msra.mxu0 0
      %1752 = vmatpush.bf16.msra.mxu0 0
      %1753 = vmatpush.bf16.msra.mxu0 0
      %1754 = vmatpush.bf16.msra.mxu0 0
      %1755 = vmatpush.bf16.msra.mxu0 0
      %1756 = vmatpush.bf16.msra.mxu0 %v1740
      %1757 = vmatmul.bf16.gmra.mxu0 %v1747
      %v1758 = vpop.f32.mrf.mxu0
      %v1759 = vadd.f32 0.0, %v1758
      %v1760 = vpop.f32.mrf.mxu0
      %1761 = vdwg.mxu0
      %1762 = vmatpush.bf16.msra.mxu0 0
      %1763 = vmatpush.bf16.msra.mxu0 0
      %1764 = vmatpush.bf16.msra.mxu0 0
      %1765 = vmatpush.bf16.msra.mxu0 0
      %1766 = vmatpush.bf16.msra.mxu0 0
      %1767 = vmatpush.bf16.msra.mxu0 0
      %1768 = vmatpush.bf16.msra.mxu0 0
      %1769 = vmatpush.bf16.msra.mxu0 %v1741
      %1770 = vmatmul.bf16.gmra.mxu0 %v1747
      %v1771 = vpop.f32.mrf.mxu0
      %v1772 = vadd.f32 0.0, %v1771
      %v1773 = vpop.f32.mrf.mxu0
      %1774 = vdwg.mxu0
      %1775 = vmatpush.bf16.msra.mxu0 0
      %1776 = vmatpush.bf16.msra.mxu0 0
      %1777 = vmatpush.bf16.msra.mxu0 0
      %1778 = vmatpush.bf16.msra.mxu0 0
      %1779 = vmatpush.bf16.msra.mxu0 0
      %1780 = vmatpush.bf16.msra.mxu0 0
      %1781 = vmatpush.bf16.msra.mxu0 0
      %1782 = vmatpush.bf16.msra.mxu0 %v1742
      %1783 = vmatmul.bf16.gmra.mxu0 %v1747
      %v1784 = vpop.f32.mrf.mxu0
      %v1785 = vadd.f32 0.0, %v1784
      %v1786 = vpop.f32.mrf.mxu0
      %1787 = vdwg.mxu0
      %v1788 = vadd.f32 %v1727, %v1759
      %v1789 = vadd.f32 %v1728, %v1772
      %v1790 = vadd.f32 %v1729, %v1785
      %v1791 = vld [vmem:[%s6] sm:$0xff]
      %1793 = vset.pattern.permute.xlu0 0
      %1794 = vperm.xlu0 %1793, %v1791
      %v1795 = vpop.permute.xlu0 %1794
      %v1797 = vmul.f32 %v1788, %v1795
      %v1798 = vmul.f32 %v1789, %v1795
      %v1799 = vmul.f32 %v1790, %v1795
      %v1800 = vld [vmem:[%s7] sm:$0xff]
      %1802 = vset.pattern.permute.xlu0 0
      %1803 = vperm.xlu0 %1802, %v1800
      %v1804 = vpop.permute.xlu0 %1803
      %v1806 = vadd.f32 %v1797, %v1804
      %v1807 = vadd.f32 %v1798, %v1804
      %v1808 = vadd.f32 %v1799, %v1804
      %v1809 = vld [vmem:[%s430] sm:$0xff]
      %v1810 = vld [vmem:[%s430 + $0x8] sm:$0xff]
      %v1811 = vld [vmem:[%s430 + $0x10] sm:$0xff]
      %v1812 = vld [vmem:[%s430 + $0x18] sm:$0xff]
      %v1813 = vld [vmem:[%s8] sm:$0xf]
      %v1818 = vunpack.c.l.b16 %v1809
      %v1819 = vunpack.c.h.b16 %v1809
      %v1820 = vunpack.c.l.b16 %v1810
      %v1821 = vunpack.c.h.b16 %v1810
      %v1822 = vunpack.c.l.b16 %v1811
      %v1823 = vunpack.c.h.b16 %v1811
      %v1824 = vunpack.c.l.b16 %v1812
      %v1825 = vunpack.c.h.b16 %v1812
      %v1826 = vpack.c.b16 %v1822, %v1818
      %v1827 = vpack.c.b16 %v1823, %v1819
      %v1828 = vpack.c.b16 %v1824, %v1820
      %v1829 = vpack.c.b16 %v1825, %v1821
      %1830 = vrot.lane.b32.xlu0 %v1826, 91
      %v1831 = vpop.permute.xlu0 %1830
      %1832 = vrot.lane.b32.xlu0 %v1827, 91
      %v1833 = vpop.permute.xlu0 %1832
      %1834 = vrot.lane.b32.xlu0 %v1828, 91
      %v1835 = vpop.permute.xlu0 %1834
      %1836 = vrot.lane.b32.xlu0 %v1829, 91
      %v1837 = vpop.permute.xlu0 %1836
      %v1838 = vsel %vm988, %v1831, %v1833
      %v1839 = vsel %vm988, %v1833, %v1835
      %v1840 = vsel %vm988, %v1835, %v1837
      %v1845 = vsel %vm490, %v1813, 0
      %1847 = vmatpush.bf16.msra.mxu0 0
      %1848 = vmatpush.bf16.msra.mxu0 0
      %1849 = vmatpush.bf16.msra.mxu0 0
      %1850 = vmatpush.bf16.msra.mxu0 0
      %1851 = vmatpush.bf16.msra.mxu0 0
      %1852 = vmatpush.bf16.msra.mxu0 0
      %1853 = vmatpush.bf16.msra.mxu0 0
      %1854 = vmatpush.bf16.msra.mxu0 %v1838
      %1855 = vmatmul.bf16.gmra.mxu0 %v1845
      %v1856 = vpop.f32.mrf.mxu0
      %v1857 = vadd.f32 0.0, %v1856
      %v1858 = vpop.f32.mrf.mxu0
      %1859 = vdwg.mxu0
      %1860 = vmatpush.bf16.msra.mxu0 0
      %1861 = vmatpush.bf16.msra.mxu0 0
      %1862 = vmatpush.bf16.msra.mxu0 0
      %1863 = vmatpush.bf16.msra.mxu0 0
      %1864 = vmatpush.bf16.msra.mxu0 0
      %1865 = vmatpush.bf16.msra.mxu0 0
      %1866 = vmatpush.bf16.msra.mxu0 0
      %1867 = vmatpush.bf16.msra.mxu0 %v1839
      %1868 = vmatmul.bf16.gmra.mxu0 %v1845
      %v1869 = vpop.f32.mrf.mxu0
      %v1870 = vadd.f32 0.0, %v1869
      %v1871 = vpop.f32.mrf.mxu0
      %1872 = vdwg.mxu0
      %1873 = vmatpush.bf16.msra.mxu0 0
      %1874 = vmatpush.bf16.msra.mxu0 0
      %1875 = vmatpush.bf16.msra.mxu0 0
      %1876 = vmatpush.bf16.msra.mxu0 0
      %1877 = vmatpush.bf16.msra.mxu0 0
      %1878 = vmatpush.bf16.msra.mxu0 0
      %1879 = vmatpush.bf16.msra.mxu0 0
      %1880 = vmatpush.bf16.msra.mxu0 %v1840
      %1881 = vmatmul.bf16.gmra.mxu0 %v1845
      %v1882 = vpop.f32.mrf.mxu0
      %v1883 = vadd.f32 0.0, %v1882
      %v1884 = vpop.f32.mrf.mxu0
      %1885 = vdwg.mxu0
      %v1886 = vld [vmem:[%s9] sm:$0xff]
      %1888 = vset.pattern.permute.xlu0 0
      %1889 = vperm.xlu0 %1888, %v1886
      %v1890 = vpop.permute.xlu0 %1889
      %v1892 = vmul.f32 %v1857, %v1890
      %v1893 = vmul.f32 %v1870, %v1890
      %v1894 = vmul.f32 %v1883, %v1890
      %v1895 = vld [vmem:[%s10] sm:$0xff]
      %1897 = vset.pattern.permute.xlu0 0
      %1898 = vperm.xlu0 %1897, %v1895
      %v1899 = vpop.permute.xlu0 %1898
      %v1901 = vadd.f32 %v1892, %v1899
      %v1902 = vadd.f32 %v1893, %v1899
      %v1903 = vadd.f32 %v1894, %v1899
      %v1904 = vadd.f32 %v1806, %v1901
      %v1905 = vadd.f32 %v1807, %v1902
      %v1906 = vadd.f32 %v1808, %v1903
      %v1907 = vmax.f32 %v1904, 0.0
      %v1908 = vmax.f32 %v1905, 0.0
      %v1909 = vmax.f32 %v1906, 0.0
      %1910 = vst [vmem:[%s439] sm:$0xff] %v1907
      %1911 = vst [vmem:[%s439 + $0x8] sm:$0xff] %v1908
      %1912 = vst [vmem:[%s439 + $0x10] sm:$0xff] %v1909
      %p1913 = scmp.lt.s32.totalorder %s26, 1
      %s1914 = scalar_select %p1913, %s26, 1
      %p1915 = scmp.lt.s32.totalorder %s27, 0
      %s1916 = scalar_select %p1915, %s27, 0
      %s1917 = smul.addr %s1916, 3
      %s1918 = smul.addr %s1914, 3
      %s1919 = sadd.s32 %s1917, %s1918
      %s1920 = smul.addr %s1919, 8
      %s1921 = scalar_lea.vmem %s11, %s1920
      // Predicated region
      $region65: #{double_conv_pallas.1} parent=63 // pred_check
        %p1922 = pneg %p297
      $region66: #{double_conv_pallas.1} parent=63 // pred_check_branch
        %1924 = sbr.rel (%p1922) target = $region68
      $region67: #{double_conv_pallas.1} parent=63 // pred_region
        _
      $region68: #{double_conv_pallas.1} parent=63 // pred_fallthru
        _
    $region64: #{double_conv_pallas.1} parent=5 // pred_fallthru
      _
    %p1925 = scmp.le.s32.totalorder 2, %s17
    // Predicated region
    $region69: #{double_conv_pallas.1} parent=5 // pred_check
      %p1926 = pneg %p1925
    $region70: #{double_conv_pallas.1} parent=5 // pred_check_branch
      %1928 = sbr.rel (%p1926) target = $region72
    $region71: #{double_conv_pallas.1} parent=5 // pred_region
      %s1929 = ssub.s32 %s17, 2
      // Predicated region
      $region73: #{double_conv_pallas.1} parent=71 // pred_check
        %p1930 = pneg %p303
      $region74: #{double_conv_pallas.1} parent=71 // pred_check_branch
        %1932 = sbr.rel (%p1930) target = $region76
      $region75: #{double_conv_pallas.1} parent=71 // pred_region
        %p1933 = scmp.lt.s32.totalorder %s28, 1
        %s1934 = scalar_select %p1933, %s28, 1
        %p1935 = scmp.lt.s32.totalorder %s29, 0
        %s1936 = scalar_select %p1935, %s29, 0
        %s1937 = smul.addr %s1936, 3
        %s1938 = smul.addr %s1934, 3
        %s1939 = sadd.s32 %s1937, %s1938
        %s1940 = smul.addr %s1939, 8
        %s1941 = scalar_lea.vmem %s11, %s1940
      $region76: #{double_conv_pallas.1} parent=71 // pred_fallthru
        _
    $region72: #{double_conv_pallas.1} parent=5 // pred_fallthru
      _
  $region6: #{double_conv_pallas.1} parent=0 // loop_footer
    %s21 = sadd.s32 1, %s17
  $region7: #{double_conv_pallas.1} parent=0 // loop_footer_branch
    %16 = sbr.rel target = $region3
  $region8: #{double_conv_pallas.1} parent=0 // loop_exit
    _

</llo_original>
